<compile_context>
chip_gen: v7x
topology: tpu7x:2x2x1
jax: 0.10.0
libtpu: 0.0.40
codegen_flags: <defaults>
</compile_context>

<pallas_src>
import functools

import jax
import jax.numpy as jnp
import numpy as np
from jax import lax
from jax.experimental import pallas as pl
from jax.experimental.pallas import tpu as pltpu


# ----------------------------------------------------------------------------
# Kernel
# ----------------------------------------------------------------------------
def _downsample_kernel(H, W,
                       x_ref, w1_ref, b1_ref, w2_ref, b2_ref, vmask_ref, selw_ref,
                       down_ref, p_ref,
                       col1_ref, col2_ref, xp2_ref):
    """One grid step: DoubleConv + MaxPool for a block of `Bt` batch elements.

    Layouts (per batch element):
      x_ref    : (Bt, Cin, (H+2)*(W+2)+2)  bf16  zero-padded, flattened input
      down_ref : (Bt, Cout, H*(W+2))             conv output, padded-row coords
      p_ref    : (Bt, Cout, (H//2)*(W//2))       pooled output
    Scratch (shared across the batch block, lane dim folded over Bt):
      col1_ref : (9*Cin,  Bt*L) bf16   conv1 im2col
      col2_ref : (9*Cout, Bt*L) bf16   conv2 im2col
      xp2_ref  : (Cout, Bt*Np2) bf16   conv2 zero-padded input
    """
    Wp = W + 2
    L = H * Wp                         # spatial extent in padded-row coordinates
    Lm = L - (Wp + 1)                  # extent of the 2x2-max intermediate
    W2 = W // 2
    Bt, Cin, Np2 = x_ref.shape
    Cout = b1_ref.shape[0]

    w1 = w1_ref[...]                   # (Cout, 9*Cin)   bf16
    w2 = w2_ref[...]                   # (Cout, 9*Cout)  bf16
    b1 = b1_ref[...]                   # (Cout, 1)       f32
    b2 = b2_ref[...]                   # (Cout, 1)       f32
    vmask = vmask_ref[...]             # (1, L)  f32: 1 on real columns, 0 on pad
    selw = selw_ref[...]               # (W, W2) f32 0/1 even-column selector

    # ---- conv1: im2col via contiguous lane slices, ONE fat MXU matmul -------
    # All offsets below are static Python ints, so Mosaic already sees the
    # alignment (pl.multiple_of is only needed for traced starts).
    for bt in range(Bt):
        for k in range(9):
            dk = (k // 3) * Wp + (k % 3)           # tap offset, flat coords
            col1_ref[k * Cin:(k + 1) * Cin, bt * L:(bt + 1) * L] = \
                x_ref[bt, :, dk:dk + L]
    h1 = jnp.dot(w1, col1_ref[...], preferred_element_type=jnp.float32)
    h1 = jnp.maximum(h1 + b1, 0.0)                 # (Cout, Bt*L) f32

    # ---- conv2 padded input: frame-only zero + one contiguous interior store
    # The interior [Wp+1, Wp+1+L) is fully overwritten every step (vmask zeroes
    # h1's two pad columns, which land exactly on the left/right pad columns),
    # so only the small frame needs clearing.
    for bt in range(Bt):
        o = bt * Np2
        xp2_ref[:, o:o + Wp + 1] = jnp.zeros((Cout, Wp + 1), xp2_ref.dtype)
        xp2_ref[:, o + Wp + 1 + L:o + Np2] = \
            jnp.zeros((Cout, Np2 - (Wp + 1 + L)), xp2_ref.dtype)
        xp2_ref[:, o + Wp + 1:o + Wp + 1 + L] = \
            (h1[:, bt * L:(bt + 1) * L] * vmask).astype(xp2_ref.dtype)

    # ---- conv2: im2col + ONE fat MXU matmul ---------------------------------
    for bt in range(Bt):
        for k in range(9):
            dk = (k // 3) * Wp + (k % 3)
            col2_ref[k * Cout:(k + 1) * Cout, bt * L:(bt + 1) * L] = \
                xp2_ref[:, bt * Np2 + dk:bt * Np2 + dk + L]
    d_all = jnp.dot(w2, col2_ref[...], preferred_element_type=jnp.float32)
    d_all = jnp.maximum(d_all + b2, 0.0)           # (Cout, Bt*L) f32

    # ---- store DoubleConv output + fused MaxPool2d(2,2) ---------------------
    for bt in range(Bt):
        d = d_all[:, bt * L:(bt + 1) * L]          # (Cout, L), still in vregs
        down_ref[bt] = d.astype(down_ref.dtype)    # lane-dense vst

        # 2x2 max computed from the in-vreg value (no down_ref reload): the
        # four taps are lane-shifted views; the +1 / +Wp shifts become XLU
        # relayouts that co-issue with the VALU maxes.
        a00 = d[:, 0:Lm]
        a01 = d[:, 1:1 + Lm]
        a10 = d[:, Wp:Wp + Lm]
        a11 = d[:, Wp + 1:Wp + 1 + Lm]
        m = jnp.maximum(jnp.maximum(a00, a01), jnp.maximum(a10, a11))

        # Even-(y, x) selection: per pooled row, one contiguous W-lane chunk
        # times a tiny (W, W/2) 0/1 matrix (exact in f32). The chunks never
        # touch the two pad columns, so no masking is needed.
        parts = []
        for yo in range(H // 2):
            chunk = m[:, 2 * yo * Wp:2 * yo * Wp + W]        # (Cout, W)
            parts.append(jnp.dot(chunk, selw,
                                 preferred_element_type=jnp.float32))
        p_bt = jnp.concatenate(parts, axis=1)                # (Cout, P)
        p_ref[bt] = p_bt.astype(p_ref.dtype)


# ----------------------------------------------------------------------------
# Host-side helpers
# ----------------------------------------------------------------------------
def _valid_col_mask(H, W):
    """(1, H*(W+2)) f32 mask: 1 on real image columns, 0 on the 2 pad columns."""
    Wp = W + 2
    m = np.zeros((1, H * Wp), np.float32)
    m.reshape(H, Wp)[:, :W] = 1.0
    return m


def _pool_col_select(W):
    """(W, W//2) 0/1 matrix selecting the even columns of a W-wide row."""
    W2 = W // 2
    s = np.zeros((W, W2), np.float32)
    s[2 * np.arange(W2), np.arange(W2)] = 1.0
    return s


def _round_up(v, m):
    return (v + m - 1) // m * m


def _vmem_bytes(shape, dtype):
    """Approximate VMEM footprint of one buffer ((sublane, lane)-tile padded)."""
    itemsize = jnp.dtype(dtype).itemsize
    sublane = {4: 8, 2: 16, 1: 32}[itemsize]
    dims = (1, 1) + tuple(shape)
    n = 1
    for d in dims[:-2]:
        n *= d
    return n * _round_up(dims[-2], sublane) * _round_up(dims[-1], 128) * itemsize


def _vmem_limit_bytes(Bt, Cin, Cout, H, W, out_dtype):
    """Honest working-set estimate: 2x only the grid-blocked arrays, 1x the
    invariant operands and scratch, modest headroom, device-derived cap."""
    Wp, Hp = W + 2, H + 2
    L, Np2 = H * Wp, Hp * Wp + 2
    P, W2 = (H // 2) * (W // 2), W // 2
    f32, bf16 = jnp.float32, jnp.bfloat16
    blocked = [((Bt, Cin, Np2), bf16),        # x     (double-buffered)
               ((Bt, Cout, L), out_dtype),    # down
               ((Bt, Cout, P), out_dtype)]    # p
    invariant = [((Cout, 9 * Cin), bf16), ((Cout, 1), f32),
                 ((Cout, 9 * Cout), bf16), ((Cout, 1), f32),
                 ((1, L), f32), ((W, W2), f32)]
    scratch = [((9 * Cin, Bt * L), bf16), ((9 * Cout, Bt * L), bf16),
               ((Cout, Bt * Np2), bf16)]
    need = 2 * sum(_vmem_bytes(s, d) for s, d in blocked)
    need += sum(_vmem_bytes(s, d) for s, d in invariant + scratch)
    need = int(need * 1.5)                    # headroom for compiler temps
    try:
        cap = int(pltpu.get_tpu_info().vmem_capacity_bytes)
    except Exception:                         # pragma: no cover - defensive
        cap = 64 * 1024 * 1024                # v7x per-TC physical VMEM
    cap = int(cap * 0.85)
    return max(min(need, cap), 16 * 1024 * 1024)


# ----------------------------------------------------------------------------
# Wrapper (PyTorch-compatible NCHW in / NCHW out)
# ----------------------------------------------------------------------------
@functools.partial(jax.jit, static_argnames=("batch_block", "out_dtype"))
def downsample_pallas(x_nchw, w1, b1, w2, b2, *, batch_block=1,
                      out_dtype=jnp.float32):
    """DownSample.forward.

    x_nchw : (B, Cin, H, W) float32.
    w1, w2 : (3, 3, Cin, Cout) / (3, 3, Cout, Cout) HWIO conv weights
             (PyTorch OIHW weights convert via w.transpose(2, 3, 1, 0)).
    b1, b2 : (Cout,) biases.
    Returns (down, p) in NCHW, matching the PyTorch module.
    Keep batch_block small enough that B // batch_block >= 2 so both v7x
    TensorCores get grid steps.
    """
    B, Cin, H, W = x_nchw.shape
    Cout = w1.shape[-1]
    assert H % 2 == 0 and W % 2 == 0, "MaxPool2d(2,2) needs even H, W"
    assert B % batch_block == 0
    Bt = batch_block
    Wp, Hp = W + 2, H + 2
    L = H * Wp
    P = (H // 2) * (W // 2)
    Np2 = Hp * Wp + 2            # +2 so every 3x3 tap is one contiguous slice

    # Host-side prep (cheap relative to the kernel):
    # zero-pad spatially, flatten to padded-row layout, cast operands to bf16.
    xpad = jnp.pad(x_nchw.astype(jnp.float32), ((0, 0), (0, 0), (1, 1), (1, 1)))
    xflat = jnp.pad(xpad.reshape(B, Cin, Hp * Wp), ((0, 0), (0, 0), (0, 2)))
    xflat = xflat.astype(jnp.bfloat16)

    # im2col weights: (3,3,Ci,Co) -> (Co, 9*Ci), bf16 MXU operands.
    w1m = w1.astype(jnp.float32).reshape(9 * Cin, Cout).T.astype(jnp.bfloat16)
    w2m = w2.astype(jnp.float32).reshape(9 * Cout, Cout).T.astype(jnp.bfloat16)
    b1c = b1.reshape(Cout, 1).astype(jnp.float32)
    b2c = b2.reshape(Cout, 1).astype(jnp.float32)
    vmask = jnp.asarray(_valid_col_mask(H, W))
    selw = jnp.asarray(_pool_col_select(W))

    kernel = functools.partial(_downsample_kernel, H, W)

    grid_spec = pltpu.PrefetchScalarGridSpec(
        num_scalar_prefetch=0,
        grid=(B // Bt,),
        in_specs=[
            pl.BlockSpec((Bt, Cin, Np2), lambda b: (b, 0, 0)),
            pl.BlockSpec((Cout, 9 * Cin), lambda b: (0, 0)),
            pl.BlockSpec((Cout, 1), lambda b: (0, 0)),
            pl.BlockSpec((Cout, 9 * Cout), lambda b: (0, 0)),
            pl.BlockSpec((Cout, 1), lambda b: (0, 0)),
            pl.BlockSpec((1, L), lambda b: (0, 0)),
            pl.BlockSpec((W, W // 2), lambda b: (0, 0)),
        ],
        out_specs=[
            pl.BlockSpec((Bt, Cout, L), lambda b: (b, 0, 0)),
            pl.BlockSpec((Bt, Cout, P), lambda b: (b, 0, 0)),
        ],
        scratch_shapes=[
            pltpu.VMEM((9 * Cin, Bt * L), jnp.bfloat16),    # conv1 im2col
            pltpu.VMEM((9 * Cout, Bt * L), jnp.bfloat16),   # conv2 im2col
            pltpu.VMEM((Cout, Bt * Np2), jnp.bfloat16),     # conv2 padded input
        ],
    )

    down_flat, p_flat = pl.pallas_call(
        kernel,
        out_shape=(
            jax.ShapeDtypeStruct((B, Cout, L), out_dtype),
            jax.ShapeDtypeStruct((B, Cout, P), out_dtype),
        ),
        grid_spec=grid_spec,
        compiler_params=pltpu.CompilerParams(
            dimension_semantics=("parallel",),
            vmem_limit_bytes=_vmem_limit_bytes(Bt, Cin, Cout, H, W, out_dtype),
        ),
    )(xflat, w1m, b1c, w2m, b2c, vmask, selw)

    # Strip the two padding columns and restore NCHW (reshape only; the
    # kernel's channel-major layout is already NCHW-flat).  A consumer that
    # accepts the padded-row layout can skip this strip entirely.
    down = down_flat.reshape(B, Cout, H, Wp)[:, :, :, :W]
    p = p_flat.reshape(B, Cout, H // 2, W // 2)
    return down, p


# ----------------------------------------------------------------------------
# Pure-JAX reference with the same numerics (bf16 operands, f32 accumulation)
# ----------------------------------------------------------------------------
def downsample_ref(x_nchw, w1, b1, w2, b2):
    x = jnp.transpose(x_nchw, (0, 2, 3, 1)).astype(jnp.float32)
    dn = ("NHWC", "HWIO", "NHWC")

    def conv_relu(h, w, b):
        y = lax.conv_general_dilated(
            h.astype(jnp.bfloat16), w.astype(jnp.bfloat16), (1, 1),
            ((1, 1), (1, 1)), dimension_numbers=dn,
            preferred_element_type=jnp.float32)
        return jnp.maximum(y + b.reshape(1, 1, 1, -1).astype(jnp.float32), 0.0)

    d = conv_relu(conv_relu(x, w1, b1), w2, b2)
    p = lax.reduce_window(d, -jnp.inf, lax.max,
                          (1, 2, 2, 1), (1, 2, 2, 1), "VALID")
    return jnp.transpose(d, (0, 3, 1, 2)), jnp.transpose(p, (0, 3, 1, 2))


if __name__ == "__main__":
    B, Cin, Cout, H, W = 2, 4, 8, 16, 16

    key = jax.random.PRNGKey(0)
    kx_, kw1, kb1, kw2, kb2 = jax.random.split(key, 5)

    x = jax.random.normal(kx_, (B, Cin, H, W), dtype=jnp.float32)
    # Deterministic synthetic parameters (HWIO layout), roughly PyTorch-scaled.
    s1 = 1.0 / np.sqrt(Cin * 9)
    s2 = 1.0 / np.sqrt(Cout * 9)
    w1 = jax.random.uniform(kw1, (3, 3, Cin, Cout), jnp.float32, -s1, s1)
    b1 = jax.random.uniform(kb1, (Cout,), jnp.float32, -s1, s1)
    w2 = jax.random.uniform(kw2, (3, 3, Cout, Cout), jnp.float32, -s2, s2)
    b2 = jax.random.uniform(kb2, (Cout,), jnp.float32, -s2, s2)

    down, p = downsample_pallas(x, w1, b1, w2, b2)
    jax.block_until_ready((down, p))

    down_r, p_r = downsample_ref(x, w1, b1, w2, b2)
    # Tolerance covers benign f32-accumulation-order / bf16-rounding wiggle
    # between the single fused MXU matmul and XLA's convolution.
    np.testing.assert_allclose(np.asarray(down), np.asarray(down_r),
                               rtol=1e-2, atol=1e-3)
    np.testing.assert_allclose(np.asarray(p), np.asarray(p_r),
                               rtol=1e-2, atol=1e-3)

    print("KERNEL_OK")
</pallas_src>

<mosaic_0001>
module attributes {stable_mosaic.version = 11 : i64} {
  func.func @_downsample_kernel(%arg0: i32, %arg1: memref<1x4x326xbf16, #tpu.memory_space<vmem>>, %arg2: memref<8x36xbf16, #tpu.memory_space<vmem>>, %arg3: memref<8x1xf32, #tpu.memory_space<vmem>>, %arg4: memref<8x72xbf16, #tpu.memory_space<vmem>>, %arg5: memref<8x1xf32, #tpu.memory_space<vmem>>, %arg6: memref<1x288xf32, #tpu.memory_space<vmem>>, %arg7: memref<16x8xf32, #tpu.memory_space<vmem>>, %arg8: memref<1x8x288xf32, #tpu.memory_space<vmem>>, %arg9: memref<1x8x64xf32, #tpu.memory_space<vmem>>, %arg10: memref<36x288xbf16, #tpu.memory_space<vmem>>, %arg11: memref<72x288xbf16, #tpu.memory_space<vmem>>, %arg12: memref<8x326xbf16, #tpu.memory_space<vmem>>) attributes {dimension_semantics = [#tpu.dimension_semantics<parallel>], iteration_bounds = array<i64: 2>, scalar_prefetch = 0 : i64, scratch_operands = 3 : i64, tpu.core_type = #tpu.core_type<tc>, window_params = [{transform_indices = @transform_0, window_bounds = array<i64: 1, 4, 326>}, {pipeline_mode = #tpu.pipeline_mode<synchronous>, transform_indices = @transform_1, window_bounds = array<i64: 8, 36>}, {pipeline_mode = #tpu.pipeline_mode<synchronous>, transform_indices = @transform_2, window_bounds = array<i64: 8, 1>}, {pipeline_mode = #tpu.pipeline_mode<synchronous>, transform_indices = @transform_3, window_bounds = array<i64: 8, 72>}, {pipeline_mode = #tpu.pipeline_mode<synchronous>, transform_indices = @transform_4, window_bounds = array<i64: 8, 1>}, {pipeline_mode = #tpu.pipeline_mode<synchronous>, transform_indices = @transform_5, window_bounds = array<i64: 1, 288>}, {pipeline_mode = #tpu.pipeline_mode<synchronous>, transform_indices = @transform_6, window_bounds = array<i64: 16, 8>}, {transform_indices = @transform_7, window_bounds = array<i64: 1, 8, 288>}, {transform_indices = @transform_8, window_bounds = array<i64: 1, 8, 64>}]} {
    %c0 = arith.constant 0 : index
    %c0_0 = arith.constant 0 : index
    %0 = vector.load %arg2[%c0, %c0_0] : memref<8x36xbf16, #tpu.memory_space<vmem>>, vector<8x36xbf16>
    %c0_1 = arith.constant 0 : index
    %c0_2 = arith.constant 0 : index
    %1 = vector.load %arg4[%c0_1, %c0_2] : memref<8x72xbf16, #tpu.memory_space<vmem>>, vector<8x72xbf16>
    %c0_3 = arith.constant 0 : index
    %c0_4 = arith.constant 0 : index
    %2 = vector.load %arg3[%c0_3, %c0_4] : memref<8x1xf32, #tpu.memory_space<vmem>>, vector<8x1xf32>
    %c0_5 = arith.constant 0 : index
    %c0_6 = arith.constant 0 : index
    %3 = vector.load %arg5[%c0_5, %c0_6] : memref<8x1xf32, #tpu.memory_space<vmem>>, vector<8x1xf32>
    %c0_7 = arith.constant 0 : index
    %c0_8 = arith.constant 0 : index
    %4 = vector.load %arg6[%c0_7, %c0_8] : memref<1x288xf32, #tpu.memory_space<vmem>>, vector<1x288xf32>
    %c0_9 = arith.constant 0 : index
    %c0_10 = arith.constant 0 : index
    %5 = vector.load %arg7[%c0_9, %c0_10] : memref<16x8xf32, #tpu.memory_space<vmem>>, vector<16x8xf32>
    %c0_11 = arith.constant 0 : index
    %c0_12 = arith.constant 0 : index
    %c0_13 = arith.constant 0 : index
    %6 = vector.load %arg1[%c0_11, %c0_12, %c0_13] : memref<1x4x326xbf16, #tpu.memory_space<vmem>>, vector<1x4x288xbf16>
    %7 = vector.shape_cast %6 : vector<1x4x288xbf16> to vector<4x288xbf16>
    %c0_14 = arith.constant 0 : index
    %c0_15 = arith.constant 0 : index
    %8 = vector.load %arg10[%c0_14, %c0_15] : memref<36x288xbf16, #tpu.memory_space<vmem>>, vector<4x288xbf16>
    tpu.vector_store %arg10[%c0_14, %c0_15], %7 {strides = array<i32>} : memref<36x288xbf16, #tpu.memory_space<vmem>>, vector<4x288xbf16>,
    %c0_16 = arith.constant 0 : index
    %c0_17 = arith.constant 0 : index
    %c1 = arith.constant 1 : index
    %9 = vector.load %arg1[%c0_16, %c0_17, %c1] : memref<1x4x326xbf16, #tpu.memory_space<vmem>>, vector<1x4x288xbf16>
    %10 = vector.shape_cast %9 : vector<1x4x288xbf16> to vector<4x288xbf16>
    %c4 = arith.constant 4 : index
    %c0_18 = arith.constant 0 : index
    %11 = vector.load %arg10[%c4, %c0_18] : memref<36x288xbf16, #tpu.memory_space<vmem>>, vector<4x288xbf16>
    tpu.vector_store %arg10[%c4, %c0_18], %10 {strides = array<i32>} : memref<36x288xbf16, #tpu.memory_space<vmem>>, vector<4x288xbf16>,
    %c0_19 = arith.constant 0 : index
    %c0_20 = arith.constant 0 : index
    %c2 = arith.constant 2 : index
    %12 = vector.load %arg1[%c0_19, %c0_20, %c2] : memref<1x4x326xbf16, #tpu.memory_space<vmem>>, vector<1x4x288xbf16>
    %13 = vector.shape_cast %12 : vector<1x4x288xbf16> to vector<4x288xbf16>
    %c8 = arith.constant 8 : index
    %c0_21 = arith.constant 0 : index
    %14 = vector.load %arg10[%c8, %c0_21] : memref<36x288xbf16, #tpu.memory_space<vmem>>, vector<4x288xbf16>
    tpu.vector_store %arg10[%c8, %c0_21], %13 {strides = array<i32>} : memref<36x288xbf16, #tpu.memory_space<vmem>>, vector<4x288xbf16>,
    %c0_22 = arith.constant 0 : index
    %c0_23 = arith.constant 0 : index
    %c18 = arith.constant 18 : index
    %15 = vector.load %arg1[%c0_22, %c0_23, %c18] : memref<1x4x326xbf16, #tpu.memory_space<vmem>>, vector<1x4x288xbf16>
    %16 = vector.shape_cast %15 : vector<1x4x288xbf16> to vector<4x288xbf16>
    %c12 = arith.constant 12 : index
    %c0_24 = arith.constant 0 : index
    %17 = vector.load %arg10[%c12, %c0_24] : memref<36x288xbf16, #tpu.memory_space<vmem>>, vector<4x288xbf16>
    tpu.vector_store %arg10[%c12, %c0_24], %16 {strides = array<i32>} : memref<36x288xbf16, #tpu.memory_space<vmem>>, vector<4x288xbf16>,
    %c0_25 = arith.constant 0 : index
    %c0_26 = arith.constant 0 : index
    %c19 = arith.constant 19 : index
    %18 = vector.load %arg1[%c0_25, %c0_26, %c19] : memref<1x4x326xbf16, #tpu.memory_space<vmem>>, vector<1x4x288xbf16>
    %19 = vector.shape_cast %18 : vector<1x4x288xbf16> to vector<4x288xbf16>
    %c16 = arith.constant 16 : index
    %c0_27 = arith.constant 0 : index
    %20 = vector.load %arg10[%c16, %c0_27] : memref<36x288xbf16, #tpu.memory_space<vmem>>, vector<4x288xbf16>
    tpu.vector_store %arg10[%c16, %c0_27], %19 {strides = array<i32>} : memref<36x288xbf16, #tpu.memory_space<vmem>>, vector<4x288xbf16>,
    %c0_28 = arith.constant 0 : index
    %c0_29 = arith.constant 0 : index
    %c20 = arith.constant 20 : index
    %21 = vector.load %arg1[%c0_28, %c0_29, %c20] : memref<1x4x326xbf16, #tpu.memory_space<vmem>>, vector<1x4x288xbf16>
    %22 = vector.shape_cast %21 : vector<1x4x288xbf16> to vector<4x288xbf16>
    %c20_30 = arith.constant 20 : index
    %c0_31 = arith.constant 0 : index
    %23 = vector.load %arg10[%c20_30, %c0_31] : memref<36x288xbf16, #tpu.memory_space<vmem>>, vector<4x288xbf16>
    tpu.vector_store %arg10[%c20_30, %c0_31], %22 {strides = array<i32>} : memref<36x288xbf16, #tpu.memory_space<vmem>>, vector<4x288xbf16>,
    %c0_32 = arith.constant 0 : index
    %c0_33 = arith.constant 0 : index
    %c36 = arith.constant 36 : index
    %24 = vector.load %arg1[%c0_32, %c0_33, %c36] : memref<1x4x326xbf16, #tpu.memory_space<vmem>>, vector<1x4x288xbf16>
    %25 = vector.shape_cast %24 : vector<1x4x288xbf16> to vector<4x288xbf16>
    %c24 = arith.constant 24 : index
    %c0_34 = arith.constant 0 : index
    %26 = vector.load %arg10[%c24, %c0_34] : memref<36x288xbf16, #tpu.memory_space<vmem>>, vector<4x288xbf16>
    tpu.vector_store %arg10[%c24, %c0_34], %25 {strides = array<i32>} : memref<36x288xbf16, #tpu.memory_space<vmem>>, vector<4x288xbf16>,
    %c0_35 = arith.constant 0 : index
    %c0_36 = arith.constant 0 : index
    %c37 = arith.constant 37 : index
    %27 = vector.load %arg1[%c0_35, %c0_36, %c37] : memref<1x4x326xbf16, #tpu.memory_space<vmem>>, vector<1x4x288xbf16>
    %28 = vector.shape_cast %27 : vector<1x4x288xbf16> to vector<4x288xbf16>
    %c28 = arith.constant 28 : index
    %c0_37 = arith.constant 0 : index
    %29 = vector.load %arg10[%c28, %c0_37] : memref<36x288xbf16, #tpu.memory_space<vmem>>, vector<4x288xbf16>
    tpu.vector_store %arg10[%c28, %c0_37], %28 {strides = array<i32>} : memref<36x288xbf16, #tpu.memory_space<vmem>>, vector<4x288xbf16>,
    %c0_38 = arith.constant 0 : index
    %c0_39 = arith.constant 0 : index
    %c38 = arith.constant 38 : index
    %30 = vector.load %arg1[%c0_38, %c0_39, %c38] : memref<1x4x326xbf16, #tpu.memory_space<vmem>>, vector<1x4x288xbf16>
    %31 = vector.shape_cast %30 : vector<1x4x288xbf16> to vector<4x288xbf16>
    %c32 = arith.constant 32 : index
    %c0_40 = arith.constant 0 : index
    %32 = vector.load %arg10[%c32, %c0_40] : memref<36x288xbf16, #tpu.memory_space<vmem>>, vector<4x288xbf16>
    tpu.vector_store %arg10[%c32, %c0_40], %31 {strides = array<i32>} : memref<36x288xbf16, #tpu.memory_space<vmem>>, vector<4x288xbf16>,
    %c0_41 = arith.constant 0 : index
    %c0_42 = arith.constant 0 : index
    %33 = vector.load %arg10[%c0_41, %c0_42] : memref<36x288xbf16, #tpu.memory_space<vmem>>, vector<36x288xbf16>
    %cst = arith.constant dense<0.000000e+00> : vector<8x288xf32>
    %34 = tpu.matmul %0, %33, %cst {dimension_numbers = #tpu.dot_dimension_numbers<[1], [0], [0], [1], [0, 0, 1, 1], [], []>} : vector<8x36xbf16>, vector<36x288xbf16>, vector<8x288xf32> -> vector<8x288xf32>
    %35 = vector.broadcast %2 : vector<8x1xf32> to vector<8x288xf32>
    %36 = arith.addf %34, %35 : vector<8x288xf32>
    %cst_43 = arith.constant 0.000000e+00 : f32
    %37 = vector.broadcast %cst_43 : f32 to vector<8x288xf32>
    %38 = arith.maximumf %36, %37 : vector<8x288xf32>
    %cst_44 = arith.constant 0.000000e+00 : bf16
    %39 = vector.broadcast %cst_44 : bf16 to vector<8x19xbf16>
    %c0_45 = arith.constant 0 : index
    %c0_46 = arith.constant 0 : index
    %40 = vector.load %arg12[%c0_45, %c0_46] : memref<8x326xbf16, #tpu.memory_space<vmem>>, vector<8x19xbf16>
    tpu.vector_store %arg12[%c0_45, %c0_46], %39 {strides = array<i32>} : memref<8x326xbf16, #tpu.memory_space<vmem>>, vector<8x19xbf16>,
    %cst_47 = arith.constant 0.000000e+00 : bf16
    %41 = vector.broadcast %cst_47 : bf16 to vector<8x19xbf16>
    %c0_48 = arith.constant 0 : index
    %c307 = arith.constant 307 : index
    %42 = vector.load %arg12[%c0_48, %c307] : memref<8x326xbf16, #tpu.memory_space<vmem>>, vector<8x19xbf16>
    tpu.vector_store %arg12[%c0_48, %c307], %41 {strides = array<i32>} : memref<8x326xbf16, #tpu.memory_space<vmem>>, vector<8x19xbf16>,
    %43 = vector.broadcast %4 : vector<1x288xf32> to vector<8x288xf32>
    %44 = arith.mulf %38, %43 : vector<8x288xf32>
    %45 = arith.truncf %44 : vector<8x288xf32> to vector<8x288xbf16>
    %c0_49 = arith.constant 0 : index
    %c19_50 = arith.constant 19 : index
    %46 = vector.load %arg12[%c0_49, %c19_50] : memref<8x326xbf16, #tpu.memory_space<vmem>>, vector<8x288xbf16>
    tpu.vector_store %arg12[%c0_49, %c19_50], %45 {strides = array<i32>} : memref<8x326xbf16, #tpu.memory_space<vmem>>, vector<8x288xbf16>,
    %c0_51 = arith.constant 0 : index
    %c0_52 = arith.constant 0 : index
    %47 = vector.load %arg12[%c0_51, %c0_52] : memref<8x326xbf16, #tpu.memory_space<vmem>>, vector<8x288xbf16>
    %c0_53 = arith.constant 0 : index
    %c0_54 = arith.constant 0 : index
    %48 = vector.load %arg11[%c0_53, %c0_54] : memref<72x288xbf16, #tpu.memory_space<vmem>>, vector<8x288xbf16>
    tpu.vector_store %arg11[%c0_53, %c0_54], %47 {strides = array<i32>} : memref<72x288xbf16, #tpu.memory_space<vmem>>, vector<8x288xbf16>,
    %c0_55 = arith.constant 0 : index
    %c1_56 = arith.constant 1 : index
    %49 = vector.load %arg12[%c0_55, %c1_56] : memref<8x326xbf16, #tpu.memory_space<vmem>>, vector<8x288xbf16>
    %c8_57 = arith.constant 8 : index
    %c0_58 = arith.constant 0 : index
    %50 = vector.load %arg11[%c8_57, %c0_58] : memref<72x288xbf16, #tpu.memory_space<vmem>>, vector<8x288xbf16>
    tpu.vector_store %arg11[%c8_57, %c0_58], %49 {strides = array<i32>} : memref<72x288xbf16, #tpu.memory_space<vmem>>, vector<8x288xbf16>,
    %c0_59 = arith.constant 0 : index
    %c2_60 = arith.constant 2 : index
    %51 = vector.load %arg12[%c0_59, %c2_60] : memref<8x326xbf16, #tpu.memory_space<vmem>>, vector<8x288xbf16>
    %c16_61 = arith.constant 16 : index
    %c0_62 = arith.constant 0 : index
    %52 = vector.load %arg11[%c16_61, %c0_62] : memref<72x288xbf16, #tpu.memory_space<vmem>>, vector<8x288xbf16>
    tpu.vector_store %arg11[%c16_61, %c0_62], %51 {strides = array<i32>} : memref<72x288xbf16, #tpu.memory_space<vmem>>, vector<8x288xbf16>,
    %c0_63 = arith.constant 0 : index
    %c18_64 = arith.constant 18 : index
    %53 = vector.load %arg12[%c0_63, %c18_64] : memref<8x326xbf16, #tpu.memory_space<vmem>>, vector<8x288xbf16>
    %c24_65 = arith.constant 24 : index
    %c0_66 = arith.constant 0 : index
    %54 = vector.load %arg11[%c24_65, %c0_66] : memref<72x288xbf16, #tpu.memory_space<vmem>>, vector<8x288xbf16>
    tpu.vector_store %arg11[%c24_65, %c0_66], %53 {strides = array<i32>} : memref<72x288xbf16, #tpu.memory_space<vmem>>, vector<8x288xbf16>,
    %c0_67 = arith.constant 0 : index
    %c19_68 = arith.constant 19 : index
    %55 = vector.load %arg12[%c0_67, %c19_68] : memref<8x326xbf16, #tpu.memory_space<vmem>>, vector<8x288xbf16>
    %c32_69 = arith.constant 32 : index
    %c0_70 = arith.constant 0 : index
    %56 = vector.load %arg11[%c32_69, %c0_70] : memref<72x288xbf16, #tpu.memory_space<vmem>>, vector<8x288xbf16>
    tpu.vector_store %arg11[%c32_69, %c0_70], %55 {strides = array<i32>} : memref<72x288xbf16, #tpu.memory_space<vmem>>, vector<8x288xbf16>,
    %c0_71 = arith.constant 0 : index
    %c20_72 = arith.constant 20 : index
    %57 = vector.load %arg12[%c0_71, %c20_72] : memref<8x326xbf16, #tpu.memory_space<vmem>>, vector<8x288xbf16>
    %c40 = arith.constant 40 : index
    %c0_73 = arith.constant 0 : index
    %58 = vector.load %arg11[%c40, %c0_73] : memref<72x288xbf16, #tpu.memory_space<vmem>>, vector<8x288xbf16>
    tpu.vector_store %arg11[%c40, %c0_73], %57 {strides = array<i32>} : memref<72x288xbf16, #tpu.memory_space<vmem>>, vector<8x288xbf16>,
    %c0_74 = arith.constant 0 : index
    %c36_75 = arith.constant 36 : index
    %59 = vector.load %arg12[%c0_74, %c36_75] : memref<8x326xbf16, #tpu.memory_space<vmem>>, vector<8x288xbf16>
    %c48 = arith.constant 48 : index
    %c0_76 = arith.constant 0 : index
    %60 = vector.load %arg11[%c48, %c0_76] : memref<72x288xbf16, #tpu.memory_space<vmem>>, vector<8x288xbf16>
    tpu.vector_store %arg11[%c48, %c0_76], %59 {strides = array<i32>} : memref<72x288xbf16, #tpu.memory_space<vmem>>, vector<8x288xbf16>,
    %c0_77 = arith.constant 0 : index
    %c37_78 = arith.constant 37 : index
    %61 = vector.load %arg12[%c0_77, %c37_78] : memref<8x326xbf16, #tpu.memory_space<vmem>>, vector<8x288xbf16>
    %c56 = arith.constant 56 : index
    %c0_79 = arith.constant 0 : index
    %62 = vector.load %arg11[%c56, %c0_79] : memref<72x288xbf16, #tpu.memory_space<vmem>>, vector<8x288xbf16>
    tpu.vector_store %arg11[%c56, %c0_79], %61 {strides = array<i32>} : memref<72x288xbf16, #tpu.memory_space<vmem>>, vector<8x288xbf16>,
    %c0_80 = arith.constant 0 : index
    %c38_81 = arith.constant 38 : index
    %63 = vector.load %arg12[%c0_80, %c38_81] : memref<8x326xbf16, #tpu.memory_space<vmem>>, vector<8x288xbf16>
    %c64 = arith.constant 64 : index
    %c0_82 = arith.constant 0 : index
    %64 = vector.load %arg11[%c64, %c0_82] : memref<72x288xbf16, #tpu.memory_space<vmem>>, vector<8x288xbf16>
    tpu.vector_store %arg11[%c64, %c0_82], %63 {strides = array<i32>} : memref<72x288xbf16, #tpu.memory_space<vmem>>, vector<8x288xbf16>,
    %c0_83 = arith.constant 0 : index
    %c0_84 = arith.constant 0 : index
    %65 = vector.load %arg11[%c0_83, %c0_84] : memref<72x288xbf16, #tpu.memory_space<vmem>>, vector<72x288xbf16>
    %cst_85 = arith.constant dense<0.000000e+00> : vector<8x288xf32>
    %66 = tpu.matmul %1, %65, %cst_85 {dimension_numbers = #tpu.dot_dimension_numbers<[1], [0], [0], [1], [0, 0, 1, 1], [], []>} : vector<8x72xbf16>, vector<72x288xbf16>, vector<8x288xf32> -> vector<8x288xf32>
    %67 = vector.broadcast %3 : vector<8x1xf32> to vector<8x288xf32>
    %68 = arith.addf %66, %67 : vector<8x288xf32>
    %cst_86 = arith.constant 0.000000e+00 : f32
    %69 = vector.broadcast %cst_86 : f32 to vector<8x288xf32>
    %70 = arith.maximumf %68, %69 : vector<8x288xf32>
    %c0_87 = arith.constant 0 : index
    %c0_88 = arith.constant 0 : index
    %c0_89 = arith.constant 0 : index
    %71 = vector.load %arg8[%c0_87, %c0_88, %c0_89] : memref<1x8x288xf32, #tpu.memory_space<vmem>>, vector<1x8x288xf32>
    %72 = vector.shape_cast %71 : vector<1x8x288xf32> to vector<8x288xf32>
    %73 = vector.shape_cast %70 : vector<8x288xf32> to vector<1x8x288xf32>
    tpu.vector_store %arg8[%c0_87, %c0_88, %c0_89], %73 {strides = array<i32>} : memref<1x8x288xf32, #tpu.memory_space<vmem>>, vector<1x8x288xf32>,
    %74 = vector.extract_strided_slice %70 {offsets = [0, 0], sizes = [8, 269], strides = [1, 1]} : vector<8x288xf32> to vector<8x269xf32>
    %75 = vector.extract_strided_slice %70 {offsets = [0, 1], sizes = [8, 269], strides = [1, 1]} : vector<8x288xf32> to vector<8x269xf32>
    %76 = vector.extract_strided_slice %70 {offsets = [0, 18], sizes = [8, 269], strides = [1, 1]} : vector<8x288xf32> to vector<8x269xf32>
    %77 = vector.extract_strided_slice %70 {offsets = [0, 19], sizes = [8, 269], strides = [1, 1]} : vector<8x288xf32> to vector<8x269xf32>
    %78 = arith.maximumf %74, %75 : vector<8x269xf32>
    %79 = arith.maximumf %76, %77 : vector<8x269xf32>
    %80 = arith.maximumf %78, %79 : vector<8x269xf32>
    %81 = vector.extract_strided_slice %80 {offsets = [0, 0], sizes = [8, 16], strides = [1, 1]} : vector<8x269xf32> to vector<8x16xf32>
    %cst_90 = arith.constant dense<0.000000e+00> : vector<8x8xf32>
    %82 = tpu.matmul %81, %5, %cst_90 {dimension_numbers = #tpu.dot_dimension_numbers<[1], [0], [0], [1], [0, 0, 1, 1], [], []>} : vector<8x16xf32>, vector<16x8xf32>, vector<8x8xf32> -> vector<8x8xf32>
    %83 = vector.extract_strided_slice %80 {offsets = [0, 36], sizes = [8, 16], strides = [1, 1]} : vector<8x269xf32> to vector<8x16xf32>
    %cst_91 = arith.constant dense<0.000000e+00> : vector<8x8xf32>
    %84 = tpu.matmul %83, %5, %cst_91 {dimension_numbers = #tpu.dot_dimension_numbers<[1], [0], [0], [1], [0, 0, 1, 1], [], []>} : vector<8x16xf32>, vector<16x8xf32>, vector<8x8xf32> -> vector<8x8xf32>
    %85 = vector.extract_strided_slice %80 {offsets = [0, 72], sizes = [8, 16], strides = [1, 1]} : vector<8x269xf32> to vector<8x16xf32>
    %cst_92 = arith.constant dense<0.000000e+00> : vector<8x8xf32>
    %86 = tpu.matmul %85, %5, %cst_92 {dimension_numbers = #tpu.dot_dimension_numbers<[1], [0], [0], [1], [0, 0, 1, 1], [], []>} : vector<8x16xf32>, vector<16x8xf32>, vector<8x8xf32> -> vector<8x8xf32>
    %87 = vector.extract_strided_slice %80 {offsets = [0, 108], sizes = [8, 16], strides = [1, 1]} : vector<8x269xf32> to vector<8x16xf32>
    %cst_93 = arith.constant dense<0.000000e+00> : vector<8x8xf32>
    %88 = tpu.matmul %87, %5, %cst_93 {dimension_numbers = #tpu.dot_dimension_numbers<[1], [0], [0], [1], [0, 0, 1, 1], [], []>} : vector<8x16xf32>, vector<16x8xf32>, vector<8x8xf32> -> vector<8x8xf32>
    %89 = vector.extract_strided_slice %80 {offsets = [0, 144], sizes = [8, 16], strides = [1, 1]} : vector<8x269xf32> to vector<8x16xf32>
    %cst_94 = arith.constant dense<0.000000e+00> : vector<8x8xf32>
    %90 = tpu.matmul %89, %5, %cst_94 {dimension_numbers = #tpu.dot_dimension_numbers<[1], [0], [0], [1], [0, 0, 1, 1], [], []>} : vector<8x16xf32>, vector<16x8xf32>, vector<8x8xf32> -> vector<8x8xf32>
    %91 = vector.extract_strided_slice %80 {offsets = [0, 180], sizes = [8, 16], strides = [1, 1]} : vector<8x269xf32> to vector<8x16xf32>
    %cst_95 = arith.constant dense<0.000000e+00> : vector<8x8xf32>
    %92 = tpu.matmul %91, %5, %cst_95 {dimension_numbers = #tpu.dot_dimension_numbers<[1], [0], [0], [1], [0, 0, 1, 1], [], []>} : vector<8x16xf32>, vector<16x8xf32>, vector<8x8xf32> -> vector<8x8xf32>
    %93 = vector.extract_strided_slice %80 {offsets = [0, 216], sizes = [8, 16], strides = [1, 1]} : vector<8x269xf32> to vector<8x16xf32>
    %cst_96 = arith.constant dense<0.000000e+00> : vector<8x8xf32>
    %94 = tpu.matmul %93, %5, %cst_96 {dimension_numbers = #tpu.dot_dimension_numbers<[1], [0], [0], [1], [0, 0, 1, 1], [], []>} : vector<8x16xf32>, vector<16x8xf32>, vector<8x8xf32> -> vector<8x8xf32>
    %95 = vector.extract_strided_slice %80 {offsets = [0, 252], sizes = [8, 16], strides = [1, 1]} : vector<8x269xf32> to vector<8x16xf32>
    %cst_97 = arith.constant dense<0.000000e+00> : vector<8x8xf32>
    %96 = tpu.matmul %95, %5, %cst_97 {dimension_numbers = #tpu.dot_dimension_numbers<[1], [0], [0], [1], [0, 0, 1, 1], [], []>} : vector<8x16xf32>, vector<16x8xf32>, vector<8x8xf32> -> vector<8x8xf32>
    %97 = tpu.concatenate %82, %84, %86, %88, %90, %92, %94, %96 in 1 : vector<8x8xf32>, vector<8x8xf32>, vector<8x8xf32>, vector<8x8xf32>, vector<8x8xf32>, vector<8x8xf32>, vector<8x8xf32>, vector<8x8xf32> -> vector<8x64xf32>
    %c0_98 = arith.constant 0 : index
    %c0_99 = arith.constant 0 : index
    %c0_100 = arith.constant 0 : index
    %98 = vector.load %arg9[%c0_98, %c0_99, %c0_100] : memref<1x8x64xf32, #tpu.memory_space<vmem>>, vector<1x8x64xf32>
    %99 = vector.shape_cast %98 : vector<1x8x64xf32> to vector<8x64xf32>
    %100 = vector.shape_cast %97 : vector<8x64xf32> to vector<1x8x64xf32>
    tpu.vector_store %arg9[%c0_98, %c0_99, %c0_100], %100 {strides = array<i32>} : memref<1x8x64xf32, #tpu.memory_space<vmem>>, vector<1x8x64xf32>,
    return
  }
  func.func @transform_0(%arg0: i32) -> (i32, i32, i32) {
    %c0_i32 = arith.constant 0 : i32
    %c0_i32_0 = arith.constant 0 : i32
    %c0_i32_1 = arith.constant 0 : i32
    return %arg0, %c0_i32, %c0_i32_0 : i32, i32, i32
  }
  func.func @transform_1(%arg0: i32) -> (i32, i32) {
    %c0_i32 = arith.constant 0 : i32
    %c0_i32_0 = arith.constant 0 : i32
    %c0_i32_1 = arith.constant 0 : i32
    return %c0_i32, %c0_i32_0 : i32, i32
  }
  func.func @transform_2(%arg0: i32) -> (i32, i32) {
    %c0_i32 = arith.constant 0 : i32
    %c0_i32_0 = arith.constant 0 : i32
    %c0_i32_1 = arith.constant 0 : i32
    return %c0_i32, %c0_i32_0 : i32, i32
  }
  func.func @transform_3(%arg0: i32) -> (i32, i32) {
    %c0_i32 = arith.constant 0 : i32
    %c0_i32_0 = arith.constant 0 : i32
    %c0_i32_1 = arith.constant 0 : i32
    return %c0_i32, %c0_i32_0 : i32, i32
  }
  func.func @transform_4(%arg0: i32) -> (i32, i32) {
    %c0_i32 = arith.constant 0 : i32
    %c0_i32_0 = arith.constant 0 : i32
    %c0_i32_1 = arith.constant 0 : i32
    return %c0_i32, %c0_i32_0 : i32, i32
  }
  func.func @transform_5(%arg0: i32) -> (i32, i32) {
    %c0_i32 = arith.constant 0 : i32
    %c0_i32_0 = arith.constant 0 : i32
    %c0_i32_1 = arith.constant 0 : i32
    return %c0_i32, %c0_i32_0 : i32, i32
  }
  func.func @transform_6(%arg0: i32) -> (i32, i32) {
    %c0_i32 = arith.constant 0 : i32
    %c0_i32_0 = arith.constant 0 : i32
    %c0_i32_1 = arith.constant 0 : i32
    return %c0_i32, %c0_i32_0 : i32, i32
  }
  func.func @transform_7(%arg0: i32) -> (i32, i32, i32) {
    %c0_i32 = arith.constant 0 : i32
    %c0_i32_0 = arith.constant 0 : i32
    %c0_i32_1 = arith.constant 0 : i32
    return %arg0, %c0_i32, %c0_i32_0 : i32, i32, i32
  }
  func.func @transform_8(%arg0: i32) -> (i32, i32, i32) {
    %c0_i32 = arith.constant 0 : i32
    %c0_i32_0 = arith.constant 0 : i32
    %c0_i32_1 = arith.constant 0 : i32
    return %arg0, %c0_i32, %c0_i32_0 : i32, i32, i32
  }
}

</mosaic_0001>

<llo_original>
// kernel: downsample_pallas.1
$region0: #{downsample_pallas.1}
  #allocation0 [shape = 'u32[]', space=smem, size = 0x4, offset = 0x4, fixed_abs, tag = 'smem constant byte address 0x4 - core index']
  #allocation1 [shape = 'u32[144,128]{1,0:T(1,128)}', space=vmem, size = 0x12000, scoped, tag = 'internal scratch']
  #allocation2 [shape = 'bf16[36,288]{1,0:T(8,128)(2,1)}', space=vmem, size = 0x7800, scoped, tag = 'scratch operand']
  #allocation3 [shape = 'bf16[72,288]{1,0:T(8,128)(2,1)}', space=vmem, size = 0xd800, scoped, tag = 'scratch operand']
  #allocation4 [shape = 'bf16[8,326]{1,0:T(8,128)(2,1)}', space=vmem, size = 0x1800, scoped, tag = 'scratch operand']
  %s0 = inlined_call_operand.vmem [shape: bf16[2,4,326], index: 0, kind: input, shape index: {}]
  %s1 = inlined_call_operand.vmem [shape: bf16[8,36], index: 1, kind: input, shape index: {}]
  %s2 = inlined_call_operand.vmem [shape: f32[8,1], index: 2, kind: input, shape index: {}]
  %s3 = inlined_call_operand.vmem [shape: bf16[8,72], index: 3, kind: input, shape index: {}]
  %s4 = inlined_call_operand.vmem [shape: f32[8,1], index: 4, kind: input, shape index: {}]
  %s5 = inlined_call_operand.vmem [shape: f32[1,288], index: 5, kind: input, shape index: {}]
  %s6 = inlined_call_operand.vmem [shape: f32[16,8], index: 6, kind: input, shape index: {}]
  %s7 = inlined_call_operand.vmem [shape: f32[2,8,288], index: 7, kind: output, shape index: {0}]
  %s8 = inlined_call_operand.vmem [shape: f32[2,8,64], index: 8, kind: output, shape index: {1}]
  %9 = xla_tuple %s7, %s8
  %s10 = sld [smem:[#allocation0]]
  $region69: #{downsample_pallas.1} parent=0
    _
  %s12 = ssub.s32 1, %s10
  %s13 = scalar_select 0, %s12, %s10
  loop: start=0, step=1, limit=4
  $region2: #{downsample_pallas.1} parent=0 // loop_pre_header
    _
  $region3: #{downsample_pallas.1} parent=0 // loop_header
    %s15 = sphi 0, %s19
    %p16 = scmp.ge.s32.totalorder %s15, 4
    %s25 = sphi 0, %s27
    %s28 = sphi 0, %s25
    %s29 = sphi 0, %s28
    %s45 = sphi 0, %s29
    %s49 = sphi 0, %s49
    %s51 = sphi 0, %s49
    %s52 = sphi 0, %s51
    %s66 = sphi 0, %s52
    %s70 = sphi 0, %s70
    %s72 = sphi 0, %s70
    %s73 = sphi 0, %s72
    %s87 = sphi 0, %s73
    %s91 = sphi 0, %s91
    %s93 = sphi 0, %s91
    %s94 = sphi 0, %s93
    %s108 = sphi 0, %s94
    %s112 = sphi 0, %s112
    %s114 = sphi 0, %s112
    %s115 = sphi 0, %s114
    %s129 = sphi 0, %s115
    %s133 = sphi 0, %s133
    %s135 = sphi 0, %s133
    %s136 = sphi 0, %s135
    %s150 = sphi 0, %s136
    %s154 = sphi 0, %s154
    %s156 = sphi 0, %s154
    %s157 = sphi 0, %s156
    %s171 = sphi 0, %s157
    %s177 = sphi 0, %s179
    %s180 = sphi 0, %s177
    %s181 = sphi 0, %s180
    %s197 = sphi 0, %s181
    %s203 = sphi 0, %s205
    %s206 = sphi 0, %s203
    %s207 = sphi 0, %s206
    %s223 = sphi 0, %s207
  $region4: #{downsample_pallas.1} parent=0 // loop_header_branch
    %18 = sbr.rel (%p16) target = $region8
  $region5: #{downsample_pallas.1} parent=0 // loop_body
    %s20 = ssub.s32 %s15, 1
    %s21 = ssub.s32 %s15, 2
    %s22 = sadd.s32 %s15, 1
    %s23 = ssub.s32 %s15, %s22
    %p24 = scmp.eq.s32.totalorder %s23, 0
    %s26 = sadd.s32 %s25, 1
    %s27 = scalar_select %p24, %s25, %s26
    %p30 = pneg %p24
    %p31 = scmp.eq.s32.totalorder %s15, 1
    %p32 = por %p30, %p31
    %p33 = scmp.ne.s32.totalorder %s25, %s28
    %p34 = scmp.eq.s32.totalorder %s15, 0
    %p35 = por %p33, %p34
    %p36 = scmp.ne.s32.totalorder %s25, %s28
    %p37 = scmp.eq.s32.totalorder %s20, 1
    %p38 = por %p36, %p37
    %p39 = scmp.ne.s32.totalorder %s28, %s29
    %p40 = scmp.eq.s32.totalorder %s20, 0
    %p41 = por %p39, %p40
    %p42 = scmp.ne.s32.totalorder %s28, %s29
    %p43 = scmp.eq.s32.totalorder %s21, 1
    %p44 = por %p42, %p43
    %p46 = scmp.ne.s32.totalorder %s29, %s45
    %p47 = scmp.eq.s32.totalorder %s21, 0
    %p48 = por %p46, %p47
    %s50 = sadd.s32 %s49, 1
    %p53 = scmp.eq.s32.totalorder %s15, 1
    %p54 = scmp.ne.s32.totalorder %s49, %s51
    %p55 = scmp.eq.s32.totalorder %s15, 0
    %p56 = por %p54, %p55
    %p57 = scmp.ne.s32.totalorder %s49, %s51
    %p58 = scmp.eq.s32.totalorder %s20, 1
    %p59 = por %p57, %p58
    %p60 = scmp.ne.s32.totalorder %s51, %s52
    %p61 = scmp.eq.s32.totalorder %s20, 0
    %p62 = por %p60, %p61
    %p63 = scmp.ne.s32.totalorder %s51, %s52
    %p64 = scmp.eq.s32.totalorder %s21, 1
    %p65 = por %p63, %p64
    %p67 = scmp.ne.s32.totalorder %s52, %s66
    %p68 = scmp.eq.s32.totalorder %s21, 0
    %p69 = por %p67, %p68
    %s71 = sadd.s32 %s70, 1
    %p74 = scmp.eq.s32.totalorder %s15, 1
    %p75 = scmp.ne.s32.totalorder %s70, %s72
    %p76 = scmp.eq.s32.totalorder %s15, 0
    %p77 = por %p75, %p76
    %p78 = scmp.ne.s32.totalorder %s70, %s72
    %p79 = scmp.eq.s32.totalorder %s20, 1
    %p80 = por %p78, %p79
    %p81 = scmp.ne.s32.totalorder %s72, %s73
    %p82 = scmp.eq.s32.totalorder %s20, 0
    %p83 = por %p81, %p82
    %p84 = scmp.ne.s32.totalorder %s72, %s73
    %p85 = scmp.eq.s32.totalorder %s21, 1
    %p86 = por %p84, %p85
    %p88 = scmp.ne.s32.totalorder %s73, %s87
    %p89 = scmp.eq.s32.totalorder %s21, 0
    %p90 = por %p88, %p89
    %s92 = sadd.s32 %s91, 1
    %p95 = scmp.eq.s32.totalorder %s15, 1
    %p96 = scmp.ne.s32.totalorder %s91, %s93
    %p97 = scmp.eq.s32.totalorder %s15, 0
    %p98 = por %p96, %p97
    %p99 = scmp.ne.s32.totalorder %s91, %s93
    %p100 = scmp.eq.s32.totalorder %s20, 1
    %p101 = por %p99, %p100
    %p102 = scmp.ne.s32.totalorder %s93, %s94
    %p103 = scmp.eq.s32.totalorder %s20, 0
    %p104 = por %p102, %p103
    %p105 = scmp.ne.s32.totalorder %s93, %s94
    %p106 = scmp.eq.s32.totalorder %s21, 1
    %p107 = por %p105, %p106
    %p109 = scmp.ne.s32.totalorder %s94, %s108
    %p110 = scmp.eq.s32.totalorder %s21, 0
    %p111 = por %p109, %p110
    %s113 = sadd.s32 %s112, 1
    %p116 = scmp.eq.s32.totalorder %s15, 1
    %p117 = scmp.ne.s32.totalorder %s112, %s114
    %p118 = scmp.eq.s32.totalorder %s15, 0
    %p119 = por %p117, %p118
    %p120 = scmp.ne.s32.totalorder %s112, %s114
    %p121 = scmp.eq.s32.totalorder %s20, 1
    %p122 = por %p120, %p121
    %p123 = scmp.ne.s32.totalorder %s114, %s115
    %p124 = scmp.eq.s32.totalorder %s20, 0
    %p125 = por %p123, %p124
    %p126 = scmp.ne.s32.totalorder %s114, %s115
    %p127 = scmp.eq.s32.totalorder %s21, 1
    %p128 = por %p126, %p127
    %p130 = scmp.ne.s32.totalorder %s115, %s129
    %p131 = scmp.eq.s32.totalorder %s21, 0
    %p132 = por %p130, %p131
    %s134 = sadd.s32 %s133, 1
    %p137 = scmp.eq.s32.totalorder %s15, 1
    %p138 = scmp.ne.s32.totalorder %s133, %s135
    %p139 = scmp.eq.s32.totalorder %s15, 0
    %p140 = por %p138, %p139
    %p141 = scmp.ne.s32.totalorder %s133, %s135
    %p142 = scmp.eq.s32.totalorder %s20, 1
    %p143 = por %p141, %p142
    %p144 = scmp.ne.s32.totalorder %s135, %s136
    %p145 = scmp.eq.s32.totalorder %s20, 0
    %p146 = por %p144, %p145
    %p147 = scmp.ne.s32.totalorder %s135, %s136
    %p148 = scmp.eq.s32.totalorder %s21, 1
    %p149 = por %p147, %p148
    %p151 = scmp.ne.s32.totalorder %s136, %s150
    %p152 = scmp.eq.s32.totalorder %s21, 0
    %p153 = por %p151, %p152
    %s155 = sadd.s32 %s154, 1
    %p158 = scmp.eq.s32.totalorder %s15, 1
    %p159 = scmp.ne.s32.totalorder %s154, %s156
    %p160 = scmp.eq.s32.totalorder %s15, 0
    %p161 = por %p159, %p160
    %p162 = scmp.ne.s32.totalorder %s154, %s156
    %p163 = scmp.eq.s32.totalorder %s20, 1
    %p164 = por %p162, %p163
    %p165 = scmp.ne.s32.totalorder %s156, %s157
    %p166 = scmp.eq.s32.totalorder %s20, 0
    %p167 = por %p165, %p166
    %p168 = scmp.ne.s32.totalorder %s156, %s157
    %p169 = scmp.eq.s32.totalorder %s21, 1
    %p170 = por %p168, %p169
    %p172 = scmp.ne.s32.totalorder %s157, %s171
    %p173 = scmp.eq.s32.totalorder %s21, 0
    %p174 = por %p172, %p173
    %s175 = ssub.s32 %s15, %s22
    %p176 = scmp.eq.s32.totalorder %s175, 0
    %s178 = sadd.s32 %s177, 1
    %s179 = scalar_select %p176, %s177, %s178
    %p182 = pneg %p176
    %p183 = scmp.eq.s32.totalorder %s15, 1
    %p184 = por %p182, %p183
    %p185 = scmp.ne.s32.totalorder %s177, %s180
    %p186 = scmp.eq.s32.totalorder %s15, 0
    %p187 = por %p185, %p186
    %p188 = scmp.ne.s32.totalorder %s177, %s180
    %p189 = scmp.eq.s32.totalorder %s20, 1
    %p190 = por %p188, %p189
    %p191 = scmp.ne.s32.totalorder %s180, %s181
    %p192 = scmp.eq.s32.totalorder %s20, 0
    %p193 = por %p191, %p192
    %p194 = scmp.ne.s32.totalorder %s180, %s181
    %p195 = scmp.eq.s32.totalorder %s21, 1
    %p196 = por %p194, %p195
    %p198 = scmp.ne.s32.totalorder %s181, %s197
    %p199 = scmp.eq.s32.totalorder %s21, 0
    %p200 = por %p198, %p199
    %s201 = ssub.s32 %s15, %s22
    %p202 = scmp.eq.s32.totalorder %s201, 0
    %s204 = sadd.s32 %s203, 1
    %s205 = scalar_select %p202, %s203, %s204
    %p208 = pneg %p202
    %p209 = scmp.eq.s32.totalorder %s15, 1
    %p210 = por %p208, %p209
    %p211 = scmp.ne.s32.totalorder %s203, %s206
    %p212 = scmp.eq.s32.totalorder %s15, 0
    %p213 = por %p211, %p212
    %p214 = scmp.ne.s32.totalorder %s203, %s206
    %p215 = scmp.eq.s32.totalorder %s20, 1
    %p216 = por %p214, %p215
    %p217 = scmp.ne.s32.totalorder %s206, %s207
    %p218 = scmp.eq.s32.totalorder %s20, 0
    %p219 = por %p217, %p218
    %p220 = scmp.ne.s32.totalorder %s206, %s207
    %p221 = scmp.eq.s32.totalorder %s21, 1
    %p222 = por %p220, %p221
    %p224 = scmp.ne.s32.totalorder %s207, %s223
    %p225 = scmp.eq.s32.totalorder %s21, 0
    %p226 = por %p224, %p225
    %p227 = scmp.le.s32.totalorder 1, %s15
    %p228 = scmp.lt.s32.totalorder %s15, 3
    %p229 = pnand %p227, %p228
    %p230 = pneg %p229
    // Predicated region
    $region9: #{downsample_pallas.1} parent=5 // pred_check
      _
    $region10: #{downsample_pallas.1} parent=5 // pred_check_branch
      %232 = sbr.rel (%p229) target = $region12
    $region11: #{downsample_pallas.1} parent=5 // pred_region
      %s233 = ssub.s32 %s15, 1
      // Predicated region
      $region13: #{downsample_pallas.1} parent=11 // pred_check
        %p234 = pneg %p62
      $region14: #{downsample_pallas.1} parent=11 // pred_check_branch
        %236 = sbr.rel (%p234) target = $region16
      $region15: #{downsample_pallas.1} parent=11 // pred_region
        _
      $region16: #{downsample_pallas.1} parent=11 // pred_fallthru
        _
      // Predicated region
      $region17: #{downsample_pallas.1} parent=11 // pred_check
        %p237 = pneg %p83
      $region18: #{downsample_pallas.1} parent=11 // pred_check_branch
        %239 = sbr.rel (%p237) target = $region20
      $region19: #{downsample_pallas.1} parent=11 // pred_region
        _
      $region20: #{downsample_pallas.1} parent=11 // pred_fallthru
        _
      // Predicated region
      $region21: #{downsample_pallas.1} parent=11 // pred_check
        %p240 = pneg %p104
      $region22: #{downsample_pallas.1} parent=11 // pred_check_branch
        %242 = sbr.rel (%p240) target = $region24
      $region23: #{downsample_pallas.1} parent=11 // pred_region
        _
      $region24: #{downsample_pallas.1} parent=11 // pred_fallthru
        _
      // Predicated region
      $region25: #{downsample_pallas.1} parent=11 // pred_check
        %p243 = pneg %p125
      $region26: #{downsample_pallas.1} parent=11 // pred_check_branch
        %245 = sbr.rel (%p243) target = $region28
      $region27: #{downsample_pallas.1} parent=11 // pred_region
        _
      $region28: #{downsample_pallas.1} parent=11 // pred_fallthru
        _
      // Predicated region
      $region29: #{downsample_pallas.1} parent=11 // pred_check
        %p246 = pneg %p146
      $region30: #{downsample_pallas.1} parent=11 // pred_check_branch
        %248 = sbr.rel (%p246) target = $region32
      $region31: #{downsample_pallas.1} parent=11 // pred_region
        _
      $region32: #{downsample_pallas.1} parent=11 // pred_fallthru
        _
      // Predicated region
      $region33: #{downsample_pallas.1} parent=11 // pred_check
        %p249 = pneg %p167
      $region34: #{downsample_pallas.1} parent=11 // pred_check_branch
        %251 = sbr.rel (%p249) target = $region36
      $region35: #{downsample_pallas.1} parent=11 // pred_region
        _
      $region36: #{downsample_pallas.1} parent=11 // pred_fallthru
        _
    $region12: #{downsample_pallas.1} parent=5 // pred_fallthru
      _
    %p252 = scmp.lt.s32.totalorder %s15, 2
    // Predicated region
    $region37: #{downsample_pallas.1} parent=5 // pred_check
      %p253 = pneg %p252
    $region38: #{downsample_pallas.1} parent=5 // pred_check_branch
      %255 = sbr.rel (%p253) target = $region40
    $region39: #{downsample_pallas.1} parent=5 // pred_region
      // Predicated region
      $region41: #{downsample_pallas.1} parent=39 // pred_check
        %p256 = pneg %p35
      $region42: #{downsample_pallas.1} parent=39 // pred_check_branch
        %258 = sbr.rel (%p256) target = $region44
      $region43: #{downsample_pallas.1} parent=39 // pred_region
        %p259 = scmp.lt.s32.totalorder %s15, 1
        %s260 = scalar_select %p259, %s15, 1
        %s261 = smul.addr %s260, 3
        %s262 = smul.addr %s261, 2
        %s263 = scalar_lea.vmem %s0, %s262
      $region44: #{downsample_pallas.1} parent=39 // pred_fallthru
        _
    $region40: #{downsample_pallas.1} parent=5 // pred_fallthru
      _
    %p264 = scmp.le.s32.totalorder 1, %s15
    %p265 = scmp.lt.s32.totalorder %s15, 3
    %p266 = pnand %p264, %p265
    %p267 = pneg %p266
    // Predicated region
    $region45: #{downsample_pallas.1} parent=5 // pred_check
      _
    $region46: #{downsample_pallas.1} parent=5 // pred_check_branch
      %269 = sbr.rel (%p266) target = $region48
    $region47: #{downsample_pallas.1} parent=5 // pred_region
      %s270 = ssub.s32 %s15, 1
      %p271 = scmp.lt.s32.totalorder %s20, 1
      %s272 = scalar_select %p271, %s20, 1
      %s273 = smul.addr %s272, 3
      %s274 = smul.addr %s273, 2
      %s275 = scalar_lea.vmem %s0, %s274
      %p276 = pneg %p41
      %p277 = pneg %p38
      %p278 = pneg %p62
      %p279 = pneg %p59
      %p280 = pneg %p83
      %p281 = pneg %p80
      %p282 = pneg %p104
      %p283 = pneg %p101
      %p284 = pneg %p125
      %p285 = pneg %p122
      %p286 = pneg %p146
      %p287 = pneg %p143
      %p288 = pneg %p167
      %p289 = pneg %p164
      %p290 = pneg %p193
      %p291 = pneg %p190
      %p292 = scmp.lt.s32.totalorder %s20, 1
      %s293 = scalar_select %p292, %s20, 1
      %s294 = smul.addr %s293, 3
      %s295 = smul.addr %s294, 8
      %s296 = scalar_lea.vmem %s7, %s295
      %p297 = pneg %p219
      %p298 = pneg %p216
      %p299 = scmp.lt.s32.totalorder %s20, 1
      %s300 = scalar_select %p299, %s20, 1
      %s301 = smul.addr %s300, 8
      %s302 = scalar_lea.vmem %s8, %s301
      %p303 = scmp.lt.s32.totalorder %s20, 1
      %s304 = scalar_select %p303, %s20, 1
      %s305 = smul.addr %s304, 3
      %s306 = smul.addr %s305, 2
      %s307 = scalar_lea.vmem %s0, %s306
      %p308 = scmp.lt.s32.totalorder %s20, 1
      %s309 = scalar_select %p308, %s20, 1
      %s310 = smul.addr %s309, 3
      %s311 = smul.addr %s310, 8
      %s312 = scalar_lea.vmem %s7, %s311
      %p313 = scmp.lt.s32.totalorder %s20, 1
      %s314 = scalar_select %p313, %s20, 1
      %s315 = smul.addr %s314, 8
      %s316 = scalar_lea.vmem %s8, %s315
      %v318 = vld [vmem:[%s1] sm:$0xf]
      %v319 = vld [vmem:[%s3] sm:$0xf]
      %v320 = vld [vmem:[%s2] sm:$0xff]
      %v321 = vld [vmem:[%s4] sm:$0xff]
      %v322 = vld [vmem:[%s5] sm:$0x7]
      %v323 = vld [vmem:[%s6] sm:$0xff]
      %v324 = vld [vmem:[%s6 + $0x8] sm:$0xff]
      %v325 = vld [vmem:[%s307] sm:$0x3f]
      %v327 = vcombine.high %v325, %v325
      %v329 = vunpack.c.l.s4 1983009808
      %v330 = vunpack.c.0.s8 %v329
      %v331 = vlaneseq
      %v332 = vshrl.u32 %v331, 7
      %v333 = vsub.s32 %v330, %v332
      %v334 = vrot.slane %v325, %v333
      %v336 = vunpack.c.l.s4 1983009808
      %v337 = vunpack.c.0.s8 %v336
      %v338 = vlaneseq
      %v339 = vshrl.u32 %v338, 7
      %v340 = vsub.s32 %v337, %v339
      %v341 = vrot.slane %v327, %v340
      %344 = vst [vmem:[#allocation2] sm:$0x33] %v334
      %vm345 = vcmask 254976
      %346 = vst.msk [vmem:[#allocation2 + $0x8] sm:$0x3] %vm345, %v341
      %v347 = vld [vmem:[%s307] sm:$0x3f]
      %v349 = vcombine.low %v347, %v347
      %v351 = vunpack.c.l.s4 1983009808
      %v352 = vunpack.c.0.s8 %v351
      %v353 = vlaneseq
      %v354 = vshrl.u32 %v353, 7
      %v355 = vsub.s32 %v352, %v354
      %v356 = vrot.slane %v349, %v355
      %v358 = vunpack.c.l.s4 1983009808
      %v359 = vunpack.c.0.s8 %v358
      %v360 = vlaneseq
      %v361 = vshrl.u32 %v360, 7
      %v362 = vsub.s32 %v359, %v361
      %v363 = vrot.slane %v347, %v362
      %364 = vrot.lane.b32.xlu0 %v356, 127
      %v365 = vpop.permute.xlu0 %364
      %366 = vrot.lane.b32.xlu0 %v363, 127
      %v367 = vpop.permute.xlu0 %366
      %v368 = vrot.slane %v365, 4
      %v369 = vrot.slane %v367, 4
      %vm370 = vcmask 1043456
      %v371 = vsel %vm370, %v368, %v369
      %vm372 = vcmask 1039360
      %v373 = vsel %vm372, %v365, %v371
      %376 = vst [vmem:[#allocation2] sm:$0xcc] %v373
      %vm377 = vcmask 257026
      %378 = vst.msk [vmem:[#allocation2 + $0x8] sm:$0xc] %vm377, %v367
      %v379 = vld [vmem:[%s307] sm:$0x3f]
      %v381 = vcombine.high %v379, %v379
      %v383 = vunpack.c.l.s4 1983009808
      %v384 = vunpack.c.0.s8 %v383
      %v385 = vlaneseq
      %v386 = vshrl.u32 %v385, 7
      %v387 = vsub.s32 %v384, %v386
      %v388 = vrot.slane %v379, %v387
      %v390 = vunpack.c.l.s4 1983009808
      %v391 = vunpack.c.0.s8 %v390
      %v392 = vlaneseq
      %v393 = vshrl.u32 %v392, 7
      %v394 = vsub.s32 %v391, %v393
      %v395 = vrot.slane %v381, %v394
      %396 = vrot.lane.b32.xlu0 %v388, 126
      %v397 = vpop.permute.xlu0 %396
      %398 = vrot.lane.b32.xlu0 %v395, 126
      %v399 = vpop.permute.xlu0 %398
      %v400 = vrot.slane %v397, 4
      %v401 = vrot.slane %v399, 4
      %v402 = vsel %vm370, %v400, %v401
      %vm403 = vcmask 1031168
      %v404 = vsel %vm403, %v397, %v402
      %407 = vst [vmem:[#allocation2 + $0xc] sm:$0x33] %v404
      %408 = vst.msk [vmem:[#allocation2 + $0x14] sm:$0x3] %vm345, %v399
      %v409 = vld [vmem:[%s307] sm:$0x3f]
      %v411 = vcombine.low %v409, %v409
      %v413 = vunpack.c.l.s4 1983009808
      %v414 = vunpack.c.0.s8 %v413
      %v415 = vlaneseq
      %v416 = vshrl.u32 %v415, 7
      %v417 = vsub.s32 %v414, %v416
      %v418 = vrot.slane %v411, %v417
      %v420 = vunpack.c.l.s4 1983009808
      %v421 = vunpack.c.0.s8 %v420
      %v422 = vlaneseq
      %v423 = vshrl.u32 %v422, 7
      %v424 = vsub.s32 %v421, %v423
      %v425 = vrot.slane %v409, %v424
      %426 = vrot.lane.b32.xlu0 %v418, 110
      %v427 = vpop.permute.xlu0 %426
      %428 = vrot.lane.b32.xlu0 %v425, 110
      %v429 = vpop.permute.xlu0 %428
      %v430 = vrot.slane %v427, 4
      %v431 = vrot.slane %v429, 4
      %v432 = vsel %vm370, %v430, %v431
      %vm433 = vcmask 900096
      %v434 = vsel %vm433, %v427, %v432
      %437 = vst [vmem:[#allocation2 + $0xc] sm:$0xcc] %v434
      %438 = vst.msk [vmem:[#allocation2 + $0x14] sm:$0xc] %vm377, %v429
      %v439 = vld [vmem:[%s307] sm:$0x3f]
      %v441 = vcombine.high %v439, %v439
      %v443 = vunpack.c.l.s4 1983009808
      %v444 = vunpack.c.0.s8 %v443
      %v445 = vlaneseq
      %v446 = vshrl.u32 %v445, 7
      %v447 = vsub.s32 %v444, %v446
      %v448 = vrot.slane %v439, %v447
      %v450 = vunpack.c.l.s4 1983009808
      %v451 = vunpack.c.0.s8 %v450
      %v452 = vlaneseq
      %v453 = vshrl.u32 %v452, 7
      %v454 = vsub.s32 %v451, %v453
      %v455 = vrot.slane %v441, %v454
      %456 = vrot.lane.b32.xlu0 %v448, 109
      %v457 = vpop.permute.xlu0 %456
      %458 = vrot.lane.b32.xlu0 %v455, 109
      %v459 = vpop.permute.xlu0 %458
      %v460 = vrot.slane %v457, 4
      %v461 = vrot.slane %v459, 4
      %v462 = vsel %vm370, %v460, %v461
      %vm463 = vcmask 891904
      %v464 = vsel %vm463, %v457, %v462
      %467 = vst [vmem:[#allocation2 + $0x18] sm:$0x33] %v464
      %468 = vst.msk [vmem:[#allocation2 + $0x20] sm:$0x3] %vm345, %v459
      %v469 = vld [vmem:[%s307] sm:$0x3f]
      %v471 = vcombine.low %v469, %v469
      %v473 = vunpack.c.l.s4 1983009808
      %v474 = vunpack.c.0.s8 %v473
      %v475 = vlaneseq
      %v476 = vshrl.u32 %v475, 7
      %v477 = vsub.s32 %v474, %v476
      %v478 = vrot.slane %v471, %v477
      %v480 = vunpack.c.l.s4 1983009808
      %v481 = vunpack.c.0.s8 %v480
      %v482 = vlaneseq
      %v483 = vshrl.u32 %v482, 7
      %v484 = vsub.s32 %v481, %v483
      %v485 = vrot.slane %v469, %v484
      %486 = vrot.lane.b32.xlu0 %v478, 108
      %v487 = vpop.permute.xlu0 %486
      %488 = vrot.lane.b32.xlu0 %v485, 108
      %v489 = vpop.permute.xlu0 %488
      %v490 = vrot.slane %v487, 4
      %v491 = vrot.slane %v489, 4
      %v492 = vsel %vm370, %v490, %v491
      %vm493 = vcmask 883712
      %v494 = vsel %vm493, %v487, %v492
      %497 = vst [vmem:[#allocation2 + $0x18] sm:$0xcc] %v494
      %498 = vst.msk [vmem:[#allocation2 + $0x20] sm:$0xc] %vm377, %v489
      %v499 = vld [vmem:[%s307] sm:$0x3f]
      %v501 = vcombine.high %v499, %v499
      %v503 = vunpack.c.l.s4 1983009808
      %v504 = vunpack.c.0.s8 %v503
      %v505 = vlaneseq
      %v506 = vshrl.u32 %v505, 7
      %v507 = vsub.s32 %v504, %v506
      %v508 = vrot.slane %v499, %v507
      %v510 = vunpack.c.l.s4 1983009808
      %v511 = vunpack.c.0.s8 %v510
      %v512 = vlaneseq
      %v513 = vshrl.u32 %v512, 7
      %v514 = vsub.s32 %v511, %v513
      %v515 = vrot.slane %v501, %v514
      %516 = vrot.lane.b32.xlu0 %v508, 92
      %v517 = vpop.permute.xlu0 %516
      %518 = vrot.lane.b32.xlu0 %v515, 92
      %v519 = vpop.permute.xlu0 %518
      %v520 = vrot.slane %v517, 4
      %v521 = vrot.slane %v519, 4
      %v522 = vsel %vm370, %v520, %v521
      %vm523 = vcmask 752640
      %v524 = vsel %vm523, %v517, %v522
      %527 = vst [vmem:[#allocation2 + $0x24] sm:$0x33] %v524
      %528 = vst.msk [vmem:[#allocation2 + $0x2c] sm:$0x3] %vm345, %v519
      %v529 = vld [vmem:[%s307] sm:$0x3f]
      %v531 = vcombine.low %v529, %v529
      %v533 = vunpack.c.l.s4 1983009808
      %v534 = vunpack.c.0.s8 %v533
      %v535 = vlaneseq
      %v536 = vshrl.u32 %v535, 7
      %v537 = vsub.s32 %v534, %v536
      %v538 = vrot.slane %v531, %v537
      %v540 = vunpack.c.l.s4 1983009808
      %v541 = vunpack.c.0.s8 %v540
      %v542 = vlaneseq
      %v543 = vshrl.u32 %v542, 7
      %v544 = vsub.s32 %v541, %v543
      %v545 = vrot.slane %v529, %v544
      %546 = vrot.lane.b32.xlu0 %v538, 91
      %v547 = vpop.permute.xlu0 %546
      %548 = vrot.lane.b32.xlu0 %v545, 91
      %v549 = vpop.permute.xlu0 %548
      %v550 = vrot.slane %v547, 4
      %v551 = vrot.slane %v549, 4
      %v552 = vsel %vm370, %v550, %v551
      %vm553 = vcmask 744448
      %v554 = vsel %vm553, %v547, %v552
      %557 = vst [vmem:[#allocation2 + $0x24] sm:$0xcc] %v554
      %558 = vst.msk [vmem:[#allocation2 + $0x2c] sm:$0xc] %vm377, %v549
      %v559 = vld [vmem:[%s307] sm:$0x3f]
      %v561 = vcombine.high %v559, %v559
      %v563 = vunpack.c.l.s4 1983009808
      %v564 = vunpack.c.0.s8 %v563
      %v565 = vlaneseq
      %v566 = vshrl.u32 %v565, 7
      %v567 = vsub.s32 %v564, %v566
      %v568 = vrot.slane %v559, %v567
      %v570 = vunpack.c.l.s4 1983009808
      %v571 = vunpack.c.0.s8 %v570
      %v572 = vlaneseq
      %v573 = vshrl.u32 %v572, 7
      %v574 = vsub.s32 %v571, %v573
      %v575 = vrot.slane %v561, %v574
      %576 = vrot.lane.b32.xlu0 %v568, 90
      %v577 = vpop.permute.xlu0 %576
      %578 = vrot.lane.b32.xlu0 %v575, 90
      %v579 = vpop.permute.xlu0 %578
      %v580 = vrot.slane %v577, 4
      %v581 = vrot.slane %v579, 4
      %v582 = vsel %vm370, %v580, %v581
      %vm583 = vcmask 736256
      %v584 = vsel %vm583, %v577, %v582
      %587 = vst [vmem:[#allocation2 + $0x30] sm:$0x33] %v584
      %588 = vst.msk [vmem:[#allocation2 + $0x38] sm:$0x3] %vm345, %v579
      %v589 = vld [vmem:[#allocation2] sm:$0xff]
      %v590 = vld [vmem:[#allocation2 + $0x8] sm:$0xf]
      %v591 = vld [vmem:[#allocation2 + $0xc] sm:$0xff]
      %v592 = vld [vmem:[#allocation2 + $0x14] sm:$0xf]
      %v593 = vld [vmem:[#allocation2 + $0x18] sm:$0xff]
      %v594 = vld [vmem:[#allocation2 + $0x20] sm:$0xf]
      %v595 = vld [vmem:[#allocation2 + $0x24] sm:$0xff]
      %v596 = vld [vmem:[#allocation2 + $0x2c] sm:$0xf]
      %v597 = vld [vmem:[#allocation2 + $0x30] sm:$0x33]
      %v598 = vld [vmem:[#allocation2 + $0x38] sm:$0x3]
      %600 = vset.pattern.permute.xlu0 0
      %601 = vperm.xlu0 %600, %v320
      %v602 = vpop.permute.xlu0 %601
      %v614 = vunpack.c.l.b16 %v589
      %v615 = vunpack.c.h.b16 %v589
      %v616 = vunpack.c.l.b16 %v590
      %v617 = vunpack.c.l.b16 %v591
      %v618 = vunpack.c.h.b16 %v591
      %v619 = vunpack.c.l.b16 %v592
      %v620 = vunpack.c.l.b16 %v593
      %v621 = vunpack.c.h.b16 %v593
      %v622 = vunpack.c.l.b16 %v594
      %v623 = vunpack.c.l.b16 %v595
      %v624 = vunpack.c.h.b16 %v595
      %v625 = vunpack.c.l.b16 %v596
      %v626 = vunpack.c.l.b16 %v597
      %v627 = vunpack.c.h.b16 %v597
      %v628 = vunpack.c.l.b16 %v598
      %v629 = vpack.c.b16 %v617, %v614
      %v630 = vpack.c.b16 %v618, %v615
      %v631 = vpack.c.b16 %v619, %v616
      %v632 = vpack.c.b16 %v623, %v620
      %v633 = vpack.c.b16 %v624, %v621
      %v634 = vpack.c.b16 %v625, %v622
      %v635 = vpack.c.b16 %v626, %v626
      %v636 = vpack.c.b16 %v627, %v627
      %v637 = vpack.c.b16 %v628, %v628
      %vm644 = vcmask 293888
      %v646 = vsel %vm644, %v318, 0
      %vm648 = vcmask 1041408
      %v650 = vsel %vm648, %v635, 0
      %v653 = vsel %vm648, %v636, 0
      %v656 = vsel %vm648, %v637, 0
      %658 = vmatprep.subr.bf16.mxu0 %v630
      %659 = vmatpush1.bf16.msra.mxu0 %v629
      %660 = vmatprep.subr.bf16.mxu0 %v633
      %661 = vmatpush1.bf16.msra.mxu0 %v632
      %662 = vmatprep.subr.bf16.mxu0 %v653
      %663 = vmatpush1.bf16.msra.mxu0 %v650
      %664 = vmatprep.subr.bf16.mxu0 0
      %665 = vmatpush1.bf16.msra.mxu0 0
      %666 = vmatprep.subr.bf16.mxu0 0
      %667 = vmatpush1.bf16.msra.mxu0 0
      %668 = vmatprep.subr.bf16.mxu0 0
      %669 = vmatpush1.bf16.msra.mxu0 0
      %670 = vmatprep.subr.bf16.mxu0 0
      %671 = vmatpush1.bf16.msra.mxu0 0
      %672 = vmatprep.subr.bf16.mxu0 0
      %673 = vmatpush1.bf16.msra.mxu0 0
      %674 = vmatprep.subr.bf16.mxu0 0
      %675 = vmatpush1.bf16.msra.mxu0 0
      %676 = vmatprep.subr.bf16.mxu0 0
      %677 = vmatpush1.bf16.msra.mxu0 0
      %678 = vmatprep.subr.bf16.mxu0 0
      %679 = vmatpush1.bf16.msra.mxu0 0
      %680 = vmatprep.subr.bf16.mxu0 0
      %681 = vmatpush1.bf16.msra.mxu0 0
      %682 = vmatprep.subr.bf16.mxu0 0
      %683 = vmatpush1.bf16.msra.mxu0 0
      %684 = vmatprep.subr.bf16.mxu0 0
      %685 = vmatpush1.bf16.msra.mxu0 0
      %686 = vmatprep.subr.bf16.mxu0 0
      %687 = vmatpush1.bf16.msra.mxu0 0
      %688 = vmatprep.subr.bf16.mxu0 0
      %689 = vmatpush1.bf16.msra.mxu0 0
      %690 = vmatprep.mubr.bf16.mxu0 0
      %691 = vmatmul.mubr.bf16.gmra.mrb[0].mxu0 %v646
      %v692 = vpop.f32.mrb[0].mxu0
      %v693 = vadd.f32 %v602, %v692
      %v694 = vpop.f32.mrb[0].mxu0
      %v695 = vadd.f32 %v602, %v694
      %v696 = vpop.f32.mrb[0].mxu0
      %v697 = vpop.f32.mrb[0].mxu0
      %698 = vdwg.mxu0
      %699 = vmatprep.subr.bf16.mxu0 0
      %700 = vmatpush1.bf16.msra.mxu0 %v631
      %701 = vmatprep.subr.bf16.mxu0 0
      %702 = vmatpush1.bf16.msra.mxu0 %v634
      %703 = vmatprep.subr.bf16.mxu0 0
      %704 = vmatpush1.bf16.msra.mxu0 %v656
      %705 = vmatprep.subr.bf16.mxu0 0
      %706 = vmatpush1.bf16.msra.mxu0 0
      %707 = vmatprep.subr.bf16.mxu0 0
      %708 = vmatpush1.bf16.msra.mxu0 0
      %709 = vmatprep.subr.bf16.mxu0 0
      %710 = vmatpush1.bf16.msra.mxu0 0
      %711 = vmatprep.subr.bf16.mxu0 0
      %712 = vmatpush1.bf16.msra.mxu0 0
      %713 = vmatprep.subr.bf16.mxu0 0
      %714 = vmatpush1.bf16.msra.mxu0 0
      %715 = vmatprep.subr.bf16.mxu0 0
      %716 = vmatpush1.bf16.msra.mxu0 0
      %717 = vmatprep.subr.bf16.mxu0 0
      %718 = vmatpush1.bf16.msra.mxu0 0
      %719 = vmatprep.subr.bf16.mxu0 0
      %720 = vmatpush1.bf16.msra.mxu0 0
      %721 = vmatprep.subr.bf16.mxu0 0
      %722 = vmatpush1.bf16.msra.mxu0 0
      %723 = vmatprep.subr.bf16.mxu0 0
      %724 = vmatpush1.bf16.msra.mxu0 0
      %725 = vmatprep.subr.bf16.mxu0 0
      %726 = vmatpush1.bf16.msra.mxu0 0
      %727 = vmatprep.subr.bf16.mxu0 0
      %728 = vmatpush1.bf16.msra.mxu0 0
      %729 = vmatprep.subr.bf16.mxu0 0
      %730 = vmatpush1.bf16.msra.mxu0 0
      %731 = vmatprep.mubr.bf16.mxu0 0
      %732 = vmatmul.mubr.bf16.gmra.mrb[0].mxu0 %v646
      %v733 = vpop.f32.mrb[0].mxu0
      %v734 = vadd.f32 %v602, %v733
      %v735 = vpop.f32.mrb[0].mxu0
      %v736 = vpop.f32.mrb[0].mxu0
      %v737 = vpop.f32.mrb[0].mxu0
      %738 = vdwg.mxu0
      %v739 = vmax.f32 %v693, 0.0
      %v740 = vmax.f32 %v695, 0.0
      %v741 = vmax.f32 %v734, 0.0
      %vm742 = vcmask 150528
      %743 = vst.msk [vmem:[#allocation4] sm:$0xf] %vm742, 0
      %vm744 = vcmask 568728
      %745 = vst.msk [vmem:[#allocation4 + $0x8] sm:$0xf] %vm744, 0
      %v747 = vlaneseq
      %v748 = vshrl.u32 %v747, 7
      %v749 = vsub.s32 0, %v748
      %v750 = vrot.slane %v322, %v749
      %v751 = vlaneseq
      %v752 = vshrl.u32 %v751, 7
      %v753 = vsub.s32 1, %v752
      %v754 = vrot.slane %v322, %v753
      %v755 = vlaneseq
      %v756 = vshrl.u32 %v755, 7
      %v757 = vsub.s32 2, %v756
      %v758 = vrot.slane %v322, %v757
      %v762 = vmul.f32 %v739, %v750
      %v763 = vmul.f32 %v740, %v754
      %v764 = vmul.f32 %v741, %v758
      %v765 = vpack.c.bf16 %v762, %v762
      %v766 = vpack.c.bf16 %v763, %v763
      %v767 = vpack.c.bf16 %v764, %v764
      %v771 = vunpack.c.l.b16 %v765
      %v772 = vunpack.c.l.b16 %v766
      %v773 = vunpack.c.l.b16 %v767
      %v774 = vpack.c.b16 %v772, %v771
      %v775 = vpack.c.b16 %v773, %v773
      %776 = vrot.lane.b32.xlu0 %v774, 19
      %v777 = vpop.permute.xlu0 %776
      %778 = vrot.lane.b32.xlu0 %v775, 19
      %v779 = vpop.permute.xlu0 %778
      %v780 = vrot.slane %v777, 4
      %vm781 = vcmask 154624
      %v782 = vsel %vm781, %v780, %v777
      %v783 = vsel %vm781, %v780, %v779
      %vm786 = vcmask 1043608
      %vm787 = vcmask 1047556
      %vm788 = vmor %vm787, %vm786
      %789 = vst.msk [vmem:[#allocation4] sm:$0xff] %vm788, %v782
      %vm790 = vcmask 412672
      %791 = vst.msk [vmem:[#allocation4 + $0x8] sm:$0xf] %vm790, %v783
      %v792 = vld [vmem:[#allocation4] sm:$0xff]
      %v793 = vld [vmem:[#allocation4 + $0x8] sm:$0xf]
      %794 = vst [vmem:[#allocation3] sm:$0xff] %v792
      %vm795 = vcmask 257024
      %796 = vst.msk [vmem:[#allocation3 + $0x8] sm:$0xf] %vm795, %v793
      %v797 = vld [vmem:[#allocation4] sm:$0xff]
      %v798 = vld [vmem:[#allocation4 + $0x8] sm:$0xf]
      %801 = vrot.lane.b32.xlu0 %v797, 127
      %v802 = vpop.permute.xlu0 %801
      %803 = vrot.lane.b32.xlu0 %v798, 127
      %v804 = vpop.permute.xlu0 %803
      %v805 = vrot.slane %v802, 4
      %v806 = vrot.slane %v804, 4
      %v807 = vsel %vm370, %v805, %v806
      %v808 = vsel %vm372, %v802, %v807
      %811 = vst [vmem:[#allocation3 + $0xc] sm:$0xff] %v808
      %812 = vst.msk [vmem:[#allocation3 + $0x14] sm:$0xf] %vm795, %v804
      %v813 = vld [vmem:[#allocation4] sm:$0xff]
      %v814 = vld [vmem:[#allocation4 + $0x8] sm:$0xf]
      %817 = vrot.lane.b32.xlu0 %v813, 126
      %v818 = vpop.permute.xlu0 %817
      %819 = vrot.lane.b32.xlu0 %v814, 126
      %v820 = vpop.permute.xlu0 %819
      %v821 = vrot.slane %v818, 4
      %v822 = vrot.slane %v820, 4
      %v823 = vsel %vm370, %v821, %v822
      %v824 = vsel %vm403, %v818, %v823
      %827 = vst [vmem:[#allocation3 + $0x18] sm:$0xff] %v824
      %828 = vst.msk [vmem:[#allocation3 + $0x20] sm:$0xf] %vm795, %v820
      %v829 = vld [vmem:[#allocation4] sm:$0xff]
      %v830 = vld [vmem:[#allocation4 + $0x8] sm:$0xf]
      %833 = vrot.lane.b32.xlu0 %v829, 110
      %v834 = vpop.permute.xlu0 %833
      %835 = vrot.lane.b32.xlu0 %v830, 110
      %v836 = vpop.permute.xlu0 %835
      %v837 = vrot.slane %v834, 4
      %v838 = vrot.slane %v836, 4
      %v839 = vsel %vm370, %v837, %v838
      %v840 = vsel %vm433, %v834, %v839
      %843 = vst [vmem:[#allocation3 + $0x24] sm:$0xff] %v840
      %844 = vst.msk [vmem:[#allocation3 + $0x2c] sm:$0xf] %vm795, %v836
      %v845 = vld [vmem:[#allocation4] sm:$0xff]
      %v846 = vld [vmem:[#allocation4 + $0x8] sm:$0xf]
      %849 = vrot.lane.b32.xlu0 %v845, 109
      %v850 = vpop.permute.xlu0 %849
      %851 = vrot.lane.b32.xlu0 %v846, 109
      %v852 = vpop.permute.xlu0 %851
      %v853 = vrot.slane %v850, 4
      %v854 = vrot.slane %v852, 4
      %v855 = vsel %vm370, %v853, %v854
      %v856 = vsel %vm463, %v850, %v855
      %859 = vst [vmem:[#allocation3 + $0x30] sm:$0xff] %v856
      %860 = vst.msk [vmem:[#allocation3 + $0x38] sm:$0xf] %vm795, %v852
      %v861 = vld [vmem:[#allocation4] sm:$0xff]
      %v862 = vld [vmem:[#allocation4 + $0x8] sm:$0xf]
      %865 = vrot.lane.b32.xlu0 %v861, 108
      %v866 = vpop.permute.xlu0 %865
      %867 = vrot.lane.b32.xlu0 %v862, 108
      %v868 = vpop.permute.xlu0 %867
      %v869 = vrot.slane %v866, 4
      %v870 = vrot.slane %v868, 4
      %v871 = vsel %vm370, %v869, %v870
      %v872 = vsel %vm493, %v866, %v871
      %875 = vst [vmem:[#allocation3 + $0x3c] sm:$0xff] %v872
      %876 = vst.msk [vmem:[#allocation3 + $0x44] sm:$0xf] %vm795, %v868
      %v877 = vld [vmem:[#allocation4] sm:$0xff]
      %v878 = vld [vmem:[#allocation4 + $0x8] sm:$0xf]
      %881 = vrot.lane.b32.xlu0 %v877, 92
      %v882 = vpop.permute.xlu0 %881
      %883 = vrot.lane.b32.xlu0 %v878, 92
      %v884 = vpop.permute.xlu0 %883
      %v885 = vrot.slane %v882, 4
      %v886 = vrot.slane %v884, 4
      %v887 = vsel %vm370, %v885, %v886
      %v888 = vsel %vm523, %v882, %v887
      %891 = vst [vmem:[#allocation3 + $0x48] sm:$0xff] %v888
      %892 = vst.msk [vmem:[#allocation3 + $0x50] sm:$0xf] %vm795, %v884
      %v893 = vld [vmem:[#allocation4] sm:$0xff]
      %v894 = vld [vmem:[#allocation4 + $0x8] sm:$0xf]
      %897 = vrot.lane.b32.xlu0 %v893, 91
      %v898 = vpop.permute.xlu0 %897
      %899 = vrot.lane.b32.xlu0 %v894, 91
      %v900 = vpop.permute.xlu0 %899
      %v901 = vrot.slane %v898, 4
      %v902 = vrot.slane %v900, 4
      %v903 = vsel %vm370, %v901, %v902
      %v904 = vsel %vm553, %v898, %v903
      %907 = vst [vmem:[#allocation3 + $0x54] sm:$0xff] %v904
      %908 = vst.msk [vmem:[#allocation3 + $0x5c] sm:$0xf] %vm795, %v900
      %v909 = vld [vmem:[#allocation4] sm:$0xff]
      %v910 = vld [vmem:[#allocation4 + $0x8] sm:$0xf]
      %913 = vrot.lane.b32.xlu0 %v909, 90
      %v914 = vpop.permute.xlu0 %913
      %915 = vrot.lane.b32.xlu0 %v910, 90
      %v916 = vpop.permute.xlu0 %915
      %v917 = vrot.slane %v914, 4
      %v918 = vrot.slane %v916, 4
      %v919 = vsel %vm370, %v917, %v918
      %v920 = vsel %vm583, %v914, %v919
      %923 = vst [vmem:[#allocation3 + $0x60] sm:$0xff] %v920
      %924 = vst.msk [vmem:[#allocation3 + $0x68] sm:$0xf] %vm795, %v916
      %v925 = vld [vmem:[#allocation3] sm:$0xff]
      %v926 = vld [vmem:[#allocation3 + $0x8] sm:$0xf]
      %v927 = vld [vmem:[#allocation3 + $0xc] sm:$0xff]
      %v928 = vld [vmem:[#allocation3 + $0x14] sm:$0xf]
      %v929 = vld [vmem:[#allocation3 + $0x18] sm:$0xff]
      %v930 = vld [vmem:[#allocation3 + $0x20] sm:$0xf]
      %v931 = vld [vmem:[#allocation3 + $0x24] sm:$0xff]
      %v932 = vld [vmem:[#allocation3 + $0x2c] sm:$0xf]
      %v933 = vld [vmem:[#allocation3 + $0x30] sm:$0xff]
      %v934 = vld [vmem:[#allocation3 + $0x38] sm:$0xf]
      %v935 = vld [vmem:[#allocation3 + $0x3c] sm:$0xff]
      %v936 = vld [vmem:[#allocation3 + $0x44] sm:$0xf]
      %v937 = vld [vmem:[#allocation3 + $0x48] sm:$0xff]
      %v938 = vld [vmem:[#allocation3 + $0x50] sm:$0xf]
      %v939 = vld [vmem:[#allocation3 + $0x54] sm:$0xff]
      %v940 = vld [vmem:[#allocation3 + $0x5c] sm:$0xf]
      %v941 = vld [vmem:[#allocation3 + $0x60] sm:$0xff]
      %v942 = vld [vmem:[#allocation3 + $0x68] sm:$0xf]
      %944 = vset.pattern.permute.xlu0 0
      %945 = vperm.xlu0 %944, %v321
      %v946 = vpop.permute.xlu0 %945
      %v966 = vunpack.c.l.b16 %v925
      %v967 = vunpack.c.h.b16 %v925
      %v968 = vunpack.c.l.b16 %v926
      %v969 = vunpack.c.l.b16 %v927
      %v970 = vunpack.c.h.b16 %v927
      %v971 = vunpack.c.l.b16 %v928
      %v972 = vunpack.c.l.b16 %v929
      %v973 = vunpack.c.h.b16 %v929
      %v974 = vunpack.c.l.b16 %v930
      %v975 = vunpack.c.l.b16 %v931
      %v976 = vunpack.c.h.b16 %v931
      %v977 = vunpack.c.l.b16 %v932
      %v978 = vunpack.c.l.b16 %v933
      %v979 = vunpack.c.h.b16 %v933
      %v980 = vunpack.c.l.b16 %v934
      %v981 = vunpack.c.l.b16 %v935
      %v982 = vunpack.c.h.b16 %v935
      %v983 = vunpack.c.l.b16 %v936
      %v984 = vunpack.c.l.b16 %v937
      %v985 = vunpack.c.h.b16 %v937
      %v986 = vunpack.c.l.b16 %v938
      %v987 = vunpack.c.l.b16 %v939
      %v988 = vunpack.c.h.b16 %v939
      %v989 = vunpack.c.l.b16 %v940
      %v990 = vunpack.c.l.b16 %v941
      %v991 = vunpack.c.h.b16 %v941
      %v992 = vunpack.c.l.b16 %v942
      %v993 = vpack.c.b16 %v969, %v966
      %v994 = vpack.c.b16 %v970, %v967
      %v995 = vpack.c.b16 %v971, %v968
      %v996 = vpack.c.b16 %v975, %v972
      %v997 = vpack.c.b16 %v976, %v973
      %v998 = vpack.c.b16 %v977, %v974
      %v999 = vpack.c.b16 %v981, %v978
      %v1000 = vpack.c.b16 %v982, %v979
      %v1001 = vpack.c.b16 %v983, %v980
      %v1002 = vpack.c.b16 %v987, %v984
      %v1003 = vpack.c.b16 %v988, %v985
      %v1004 = vpack.c.b16 %v989, %v986
      %v1005 = vpack.c.b16 %v990, %v990
      %v1006 = vpack.c.b16 %v991, %v991
      %v1007 = vpack.c.b16 %v992, %v992
      %vm1020 = vcmask 588800
      %v1022 = vsel %vm1020, %v319, 0
      %vm1024 = vcmask 1043456
      %v1026 = vsel %vm1024, %v1005, 0
      %v1029 = vsel %vm1024, %v1006, 0
      %v1032 = vsel %vm1024, %v1007, 0
      %1034 = vmatprep.subr.bf16.mxu0 %v994
      %1035 = vmatpush1.bf16.msra.mxu0 %v993
      %1036 = vmatprep.subr.bf16.mxu0 %v997
      %1037 = vmatpush1.bf16.msra.mxu0 %v996
      %1038 = vmatprep.subr.bf16.mxu0 %v1000
      %1039 = vmatpush1.bf16.msra.mxu0 %v999
      %1040 = vmatprep.subr.bf16.mxu0 %v1003
      %1041 = vmatpush1.bf16.msra.mxu0 %v1002
      %1042 = vmatprep.subr.bf16.mxu0 %v1029
      %1043 = vmatpush1.bf16.msra.mxu0 %v1026
      %1044 = vmatprep.subr.bf16.mxu0 0
      %1045 = vmatpush1.bf16.msra.mxu0 0
      %1046 = vmatprep.subr.bf16.mxu0 0
      %1047 = vmatpush1.bf16.msra.mxu0 0
      %1048 = vmatprep.subr.bf16.mxu0 0
      %1049 = vmatpush1.bf16.msra.mxu0 0
      %1050 = vmatprep.subr.bf16.mxu0 0
      %1051 = vmatpush1.bf16.msra.mxu0 0
      %1052 = vmatprep.subr.bf16.mxu0 0
      %1053 = vmatpush1.bf16.msra.mxu0 0
      %1054 = vmatprep.subr.bf16.mxu0 0
      %1055 = vmatpush1.bf16.msra.mxu0 0
      %1056 = vmatprep.subr.bf16.mxu0 0
      %1057 = vmatpush1.bf16.msra.mxu0 0
      %1058 = vmatprep.subr.bf16.mxu0 0
      %1059 = vmatpush1.bf16.msra.mxu0 0
      %1060 = vmatprep.subr.bf16.mxu0 0
      %1061 = vmatpush1.bf16.msra.mxu0 0
      %1062 = vmatprep.subr.bf16.mxu0 0
      %1063 = vmatpush1.bf16.msra.mxu0 0
      %1064 = vmatprep.subr.bf16.mxu0 0
      %1065 = vmatpush1.bf16.msra.mxu0 0
      %1066 = vmatprep.mubr.bf16.mxu0 0
      %1067 = vmatmul.mubr.bf16.gmra.mrb[0].mxu0 %v1022
      %v1068 = vpop.f32.mrb[0].mxu0
      %v1069 = vadd.f32 %v946, %v1068
      %v1070 = vpop.f32.mrb[0].mxu0
      %v1071 = vadd.f32 %v946, %v1070
      %v1072 = vpop.f32.mrb[0].mxu0
      %v1073 = vpop.f32.mrb[0].mxu0
      %1074 = vdwg.mxu0
      %1075 = vmatprep.subr.bf16.mxu0 0
      %1076 = vmatpush1.bf16.msra.mxu0 %v995
      %1077 = vmatprep.subr.bf16.mxu0 0
      %1078 = vmatpush1.bf16.msra.mxu0 %v998
      %1079 = vmatprep.subr.bf16.mxu0 0
      %1080 = vmatpush1.bf16.msra.mxu0 %v1001
      %1081 = vmatprep.subr.bf16.mxu0 0
      %1082 = vmatpush1.bf16.msra.mxu0 %v1004
      %1083 = vmatprep.subr.bf16.mxu0 0
      %1084 = vmatpush1.bf16.msra.mxu0 %v1032
      %1085 = vmatprep.subr.bf16.mxu0 0
      %1086 = vmatpush1.bf16.msra.mxu0 0
      %1087 = vmatprep.subr.bf16.mxu0 0
      %1088 = vmatpush1.bf16.msra.mxu0 0
      %1089 = vmatprep.subr.bf16.mxu0 0
      %1090 = vmatpush1.bf16.msra.mxu0 0
      %1091 = vmatprep.subr.bf16.mxu0 0
      %1092 = vmatpush1.bf16.msra.mxu0 0
      %1093 = vmatprep.subr.bf16.mxu0 0
      %1094 = vmatpush1.bf16.msra.mxu0 0
      %1095 = vmatprep.subr.bf16.mxu0 0
      %1096 = vmatpush1.bf16.msra.mxu0 0
      %1097 = vmatprep.subr.bf16.mxu0 0
      %1098 = vmatpush1.bf16.msra.mxu0 0
      %1099 = vmatprep.subr.bf16.mxu0 0
      %1100 = vmatpush1.bf16.msra.mxu0 0
      %1101 = vmatprep.subr.bf16.mxu0 0
      %1102 = vmatpush1.bf16.msra.mxu0 0
      %1103 = vmatprep.subr.bf16.mxu0 0
      %1104 = vmatpush1.bf16.msra.mxu0 0
      %1105 = vmatprep.subr.bf16.mxu0 0
      %1106 = vmatpush1.bf16.msra.mxu0 0
      %1107 = vmatprep.mubr.bf16.mxu0 0
      %1108 = vmatmul.mubr.bf16.gmra.mrb[0].mxu0 %v1022
      %v1109 = vpop.f32.mrb[0].mxu0
      %v1110 = vadd.f32 %v946, %v1109
      %v1111 = vpop.f32.mrb[0].mxu0
      %v1112 = vpop.f32.mrb[0].mxu0
      %v1113 = vpop.f32.mrb[0].mxu0
      %1114 = vdwg.mxu0
      %v1115 = vmax.f32 %v1069, 0.0
      %v1116 = vmax.f32 %v1071, 0.0
      %v1117 = vmax.f32 %v1110, 0.0
      %1118 = vst [vmem:[%s312] sm:$0xff] %v1115
      %1119 = vst [vmem:[%s312 + $0x8] sm:$0xff] %v1116
      %vm1120 = vcmask 261120
      %1121 = vst.msk [vmem:[%s312 + $0x10] sm:$0xff] %vm1120, %v1117
      %1125 = vrot.lane.b32.xlu0 %v1115, 127
      %v1126 = vpop.permute.xlu0 %1125
      %1127 = vrot.lane.b32.xlu0 %v1116, 127
      %v1128 = vpop.permute.xlu0 %1127
      %1129 = vrot.lane.b32.xlu0 %v1117, 127
      %v1130 = vpop.permute.xlu0 %1129
      %vm1131 = vcmask 1039360
      %v1132 = vsel %vm1131, %v1126, %v1128
      %v1133 = vsel %vm1131, %v1128, %v1130
      %v1137 = vmax.f32 %v1115, %v1132
      %v1138 = vmax.f32 %v1116, %v1133
      %v1139 = vmax.f32 %v1117, %v1130
      %1143 = vrot.lane.b32.xlu0 %v1137, 110
      %v1144 = vpop.permute.xlu0 %1143
      %1145 = vrot.lane.b32.xlu0 %v1138, 110
      %v1146 = vpop.permute.xlu0 %1145
      %1147 = vrot.lane.b32.xlu0 %v1139, 110
      %v1148 = vpop.permute.xlu0 %1147
      %vm1149 = vcmask 900096
      %v1150 = vsel %vm1149, %v1144, %v1146
      %v1151 = vsel %vm1149, %v1146, %v1148
      %v1155 = vmax.f32 %v1137, %v1150
      %v1156 = vmax.f32 %v1138, %v1151
      %v1157 = vmax.f32 %v1139, %v1148
      %vm1158 = vcmask 130048
      %v1160 = vsel %vm1158, %v1155, 0
      %1162 = vmatprep.subr.mxu0 0.0
      %1163 = vmatpush1.msra.mxu0 %v323
      %1164 = vmatprep.subr.mxu0 0.0
      %1165 = vmatpush1.msra.mxu0 %v324
      %1166 = vmatprep.subr.mxu0 0.0
      %1167 = vmatpush1.msra.mxu0 0.0
      %1168 = vmatprep.subr.mxu0 0.0
      %1169 = vmatpush1.msra.mxu0 0.0
      %1170 = vmatprep.subr.mxu0 0.0
      %1171 = vmatpush1.msra.mxu0 0.0
      %1172 = vmatprep.subr.mxu0 0.0
      %1173 = vmatpush1.msra.mxu0 0.0
      %1174 = vmatprep.subr.mxu0 0.0
      %1175 = vmatpush1.msra.mxu0 0.0
      %1176 = vmatprep.subr.mxu0 0.0
      %1177 = vmatpush1.msra.mxu0 0.0
      %1178 = vmatprep.subr.mxu0 0.0
      %1179 = vmatpush1.msra.mxu0 0.0
      %1180 = vmatprep.subr.mxu0 0.0
      %1181 = vmatpush1.msra.mxu0 0.0
      %1182 = vmatprep.subr.mxu0 0.0
      %1183 = vmatpush1.msra.mxu0 0.0
      %1184 = vmatprep.subr.mxu0 0.0
      %1185 = vmatpush1.msra.mxu0 0.0
      %1186 = vmatprep.subr.mxu0 0.0
      %1187 = vmatpush1.msra.mxu0 0.0
      %1188 = vmatprep.subr.mxu0 0.0
      %1189 = vmatpush1.msra.mxu0 0.0
      %1190 = vmatprep.subr.mxu0 0.0
      %1191 = vmatpush1.msra.mxu0 0.0
      %1192 = vmatprep.subr.mxu0 0.0
      %1193 = vmatpush1.msra.mxu0 0.0
      %1194 = vmatprep.subr.mxu0 0.0
      %1195 = vmatpush1.msra.mxu0 0.0
      %1196 = vmatprep.subr.mxu0 0.0
      %1197 = vmatpush1.msra.mxu0 0.0
      %1198 = vmatprep.subr.mxu0 0.0
      %1199 = vmatpush1.msra.mxu0 0.0
      %1200 = vmatprep.subr.mxu0 0.0
      %1201 = vmatpush1.msra.mxu0 0.0
      %1202 = vmatprep.subr.mxu0 0.0
      %1203 = vmatpush1.msra.mxu0 0.0
      %1204 = vmatprep.subr.mxu0 0.0
      %1205 = vmatpush1.msra.mxu0 0.0
      %1206 = vmatprep.subr.mxu0 0.0
      %1207 = vmatpush1.msra.mxu0 0.0
      %1208 = vmatprep.subr.mxu0 0.0
      %1209 = vmatpush1.msra.mxu0 0.0
      %1210 = vmatprep.subr.mxu0 0.0
      %1211 = vmatpush1.msra.mxu0 0.0
      %1212 = vmatprep.subr.mxu0 0.0
      %1213 = vmatpush1.msra.mxu0 0.0
      %1214 = vmatprep.subr.mxu0 0.0
      %1215 = vmatpush1.msra.mxu0 0.0
      %1216 = vmatprep.subr.mxu0 0.0
      %1217 = vmatpush1.msra.mxu0 0.0
      %1218 = vmatprep.subr.mxu0 0.0
      %1219 = vmatpush1.msra.mxu0 0.0
      %1220 = vmatprep.subr.mxu0 0.0
      %1221 = vmatpush1.msra.mxu0 0.0
      %1222 = vmatprep.subr.mxu0 0.0
      %1223 = vmatpush1.msra.mxu0 0.0
      %1224 = vmatprep.subr.mxu0 0.0
      %1225 = vmatpush1.msra.mxu0 0.0
      %1226 = vmatprep.mubr.f32.mxu0 0.0
      %1227 = vmatmul.mubr.f32.gmra.mrb[0].mxu0 %v1160
      %v1228 = vpop.f32.mrb[0].mxu0
      %v1229 = vadd.f32 0.0, %v1228
      %v1230 = vpop.f32.mrb[0].mxu0
      %1231 = vdwg.mxu0
      %1232 = vrot.lane.b32.xlu0 %v1155, 92
      %v1233 = vpop.permute.xlu0 %1232
      %v1234 = vsel %vm1158, %v1233, 0
      %1236 = vmatprep.subr.mxu0 0.0
      %1237 = vmatpush1.msra.mxu0 %v323
      %1238 = vmatprep.subr.mxu0 0.0
      %1239 = vmatpush1.msra.mxu0 %v324
      %1240 = vmatprep.subr.mxu0 0.0
      %1241 = vmatpush1.msra.mxu0 0.0
      %1242 = vmatprep.subr.mxu0 0.0
      %1243 = vmatpush1.msra.mxu0 0.0
      %1244 = vmatprep.subr.mxu0 0.0
      %1245 = vmatpush1.msra.mxu0 0.0
      %1246 = vmatprep.subr.mxu0 0.0
      %1247 = vmatpush1.msra.mxu0 0.0
      %1248 = vmatprep.subr.mxu0 0.0
      %1249 = vmatpush1.msra.mxu0 0.0
      %1250 = vmatprep.subr.mxu0 0.0
      %1251 = vmatpush1.msra.mxu0 0.0
      %1252 = vmatprep.subr.mxu0 0.0
      %1253 = vmatpush1.msra.mxu0 0.0
      %1254 = vmatprep.subr.mxu0 0.0
      %1255 = vmatpush1.msra.mxu0 0.0
      %1256 = vmatprep.subr.mxu0 0.0
      %1257 = vmatpush1.msra.mxu0 0.0
      %1258 = vmatprep.subr.mxu0 0.0
      %1259 = vmatpush1.msra.mxu0 0.0
      %1260 = vmatprep.subr.mxu0 0.0
      %1261 = vmatpush1.msra.mxu0 0.0
      %1262 = vmatprep.subr.mxu0 0.0
      %1263 = vmatpush1.msra.mxu0 0.0
      %1264 = vmatprep.subr.mxu0 0.0
      %1265 = vmatpush1.msra.mxu0 0.0
      %1266 = vmatprep.subr.mxu0 0.0
      %1267 = vmatpush1.msra.mxu0 0.0
      %1268 = vmatprep.subr.mxu0 0.0
      %1269 = vmatpush1.msra.mxu0 0.0
      %1270 = vmatprep.subr.mxu0 0.0
      %1271 = vmatpush1.msra.mxu0 0.0
      %1272 = vmatprep.subr.mxu0 0.0
      %1273 = vmatpush1.msra.mxu0 0.0
      %1274 = vmatprep.subr.mxu0 0.0
      %1275 = vmatpush1.msra.mxu0 0.0
      %1276 = vmatprep.subr.mxu0 0.0
      %1277 = vmatpush1.msra.mxu0 0.0
      %1278 = vmatprep.subr.mxu0 0.0
      %1279 = vmatpush1.msra.mxu0 0.0
      %1280 = vmatprep.subr.mxu0 0.0
      %1281 = vmatpush1.msra.mxu0 0.0
      %1282 = vmatprep.subr.mxu0 0.0
      %1283 = vmatpush1.msra.mxu0 0.0
      %1284 = vmatprep.subr.mxu0 0.0
      %1285 = vmatpush1.msra.mxu0 0.0
      %1286 = vmatprep.subr.mxu0 0.0
      %1287 = vmatpush1.msra.mxu0 0.0
      %1288 = vmatprep.subr.mxu0 0.0
      %1289 = vmatpush1.msra.mxu0 0.0
      %1290 = vmatprep.subr.mxu0 0.0
      %1291 = vmatpush1.msra.mxu0 0.0
      %1292 = vmatprep.subr.mxu0 0.0
      %1293 = vmatpush1.msra.mxu0 0.0
      %1294 = vmatprep.subr.mxu0 0.0
      %1295 = vmatpush1.msra.mxu0 0.0
      %1296 = vmatprep.subr.mxu0 0.0
      %1297 = vmatpush1.msra.mxu0 0.0
      %1298 = vmatprep.subr.mxu0 0.0
      %1299 = vmatpush1.msra.mxu0 0.0
      %1300 = vmatprep.mubr.f32.mxu0 0.0
      %1301 = vmatmul.mubr.f32.gmra.mrb[0].mxu0 %v1234
      %v1302 = vpop.f32.mrb[0].mxu0
      %v1303 = vadd.f32 0.0, %v1302
      %v1304 = vpop.f32.mrb[0].mxu0
      %1305 = vdwg.mxu0
      %1306 = vrot.lane.b32.xlu0 %v1155, 56
      %v1307 = vpop.permute.xlu0 %1306
      %v1308 = vsel %vm1158, %v1307, 0
      %1310 = vmatprep.subr.mxu0 0.0
      %1311 = vmatpush1.msra.mxu0 %v323
      %1312 = vmatprep.subr.mxu0 0.0
      %1313 = vmatpush1.msra.mxu0 %v324
      %1314 = vmatprep.subr.mxu0 0.0
      %1315 = vmatpush1.msra.mxu0 0.0
      %1316 = vmatprep.subr.mxu0 0.0
      %1317 = vmatpush1.msra.mxu0 0.0
      %1318 = vmatprep.subr.mxu0 0.0
      %1319 = vmatpush1.msra.mxu0 0.0
      %1320 = vmatprep.subr.mxu0 0.0
      %1321 = vmatpush1.msra.mxu0 0.0
      %1322 = vmatprep.subr.mxu0 0.0
      %1323 = vmatpush1.msra.mxu0 0.0
      %1324 = vmatprep.subr.mxu0 0.0
      %1325 = vmatpush1.msra.mxu0 0.0
      %1326 = vmatprep.subr.mxu0 0.0
      %1327 = vmatpush1.msra.mxu0 0.0
      %1328 = vmatprep.subr.mxu0 0.0
      %1329 = vmatpush1.msra.mxu0 0.0
      %1330 = vmatprep.subr.mxu0 0.0
      %1331 = vmatpush1.msra.mxu0 0.0
      %1332 = vmatprep.subr.mxu0 0.0
      %1333 = vmatpush1.msra.mxu0 0.0
      %1334 = vmatprep.subr.mxu0 0.0
      %1335 = vmatpush1.msra.mxu0 0.0
      %1336 = vmatprep.subr.mxu0 0.0
      %1337 = vmatpush1.msra.mxu0 0.0
      %1338 = vmatprep.subr.mxu0 0.0
      %1339 = vmatpush1.msra.mxu0 0.0
      %1340 = vmatprep.subr.mxu0 0.0
      %1341 = vmatpush1.msra.mxu0 0.0
      %1342 = vmatprep.subr.mxu0 0.0
      %1343 = vmatpush1.msra.mxu0 0.0
      %1344 = vmatprep.subr.mxu0 0.0
      %1345 = vmatpush1.msra.mxu0 0.0
      %1346 = vmatprep.subr.mxu0 0.0
      %1347 = vmatpush1.msra.mxu0 0.0
      %1348 = vmatprep.subr.mxu0 0.0
      %1349 = vmatpush1.msra.mxu0 0.0
      %1350 = vmatprep.subr.mxu0 0.0
      %1351 = vmatpush1.msra.mxu0 0.0
      %1352 = vmatprep.subr.mxu0 0.0
      %1353 = vmatpush1.msra.mxu0 0.0
      %1354 = vmatprep.subr.mxu0 0.0
      %1355 = vmatpush1.msra.mxu0 0.0
      %1356 = vmatprep.subr.mxu0 0.0
      %1357 = vmatpush1.msra.mxu0 0.0
      %1358 = vmatprep.subr.mxu0 0.0
      %1359 = vmatpush1.msra.mxu0 0.0
      %1360 = vmatprep.subr.mxu0 0.0
      %1361 = vmatpush1.msra.mxu0 0.0
      %1362 = vmatprep.subr.mxu0 0.0
      %1363 = vmatpush1.msra.mxu0 0.0
      %1364 = vmatprep.subr.mxu0 0.0
      %1365 = vmatpush1.msra.mxu0 0.0
      %1366 = vmatprep.subr.mxu0 0.0
      %1367 = vmatpush1.msra.mxu0 0.0
      %1368 = vmatprep.subr.mxu0 0.0
      %1369 = vmatpush1.msra.mxu0 0.0
      %1370 = vmatprep.subr.mxu0 0.0
      %1371 = vmatpush1.msra.mxu0 0.0
      %1372 = vmatprep.subr.mxu0 0.0
      %1373 = vmatpush1.msra.mxu0 0.0
      %1374 = vmatprep.mubr.f32.mxu0 0.0
      %1375 = vmatmul.mubr.f32.gmra.mrb[0].mxu0 %v1308
      %v1376 = vpop.f32.mrb[0].mxu0
      %v1377 = vadd.f32 0.0, %v1376
      %v1378 = vpop.f32.mrb[0].mxu0
      %1379 = vdwg.mxu0
      %1380 = vrot.lane.b32.xlu0 %v1155, 20
      %v1381 = vpop.permute.xlu0 %1380
      %v1382 = vsel %vm1158, %v1381, 0
      %1384 = vmatprep.subr.mxu0 0.0
      %1385 = vmatpush1.msra.mxu0 %v323
      %1386 = vmatprep.subr.mxu0 0.0
      %1387 = vmatpush1.msra.mxu0 %v324
      %1388 = vmatprep.subr.mxu0 0.0
      %1389 = vmatpush1.msra.mxu0 0.0
      %1390 = vmatprep.subr.mxu0 0.0
      %1391 = vmatpush1.msra.mxu0 0.0
      %1392 = vmatprep.subr.mxu0 0.0
      %1393 = vmatpush1.msra.mxu0 0.0
      %1394 = vmatprep.subr.mxu0 0.0
      %1395 = vmatpush1.msra.mxu0 0.0
      %1396 = vmatprep.subr.mxu0 0.0
      %1397 = vmatpush1.msra.mxu0 0.0
      %1398 = vmatprep.subr.mxu0 0.0
      %1399 = vmatpush1.msra.mxu0 0.0
      %1400 = vmatprep.subr.mxu0 0.0
      %1401 = vmatpush1.msra.mxu0 0.0
      %1402 = vmatprep.subr.mxu0 0.0
      %1403 = vmatpush1.msra.mxu0 0.0
      %1404 = vmatprep.subr.mxu0 0.0
      %1405 = vmatpush1.msra.mxu0 0.0
      %1406 = vmatprep.subr.mxu0 0.0
      %1407 = vmatpush1.msra.mxu0 0.0
      %1408 = vmatprep.subr.mxu0 0.0
      %1409 = vmatpush1.msra.mxu0 0.0
      %1410 = vmatprep.subr.mxu0 0.0
      %1411 = vmatpush1.msra.mxu0 0.0
      %1412 = vmatprep.subr.mxu0 0.0
      %1413 = vmatpush1.msra.mxu0 0.0
      %1414 = vmatprep.subr.mxu0 0.0
      %1415 = vmatpush1.msra.mxu0 0.0
      %1416 = vmatprep.subr.mxu0 0.0
      %1417 = vmatpush1.msra.mxu0 0.0
      %1418 = vmatprep.subr.mxu0 0.0
      %1419 = vmatpush1.msra.mxu0 0.0
      %1420 = vmatprep.subr.mxu0 0.0
      %1421 = vmatpush1.msra.mxu0 0.0
      %1422 = vmatprep.subr.mxu0 0.0
      %1423 = vmatpush1.msra.mxu0 0.0
      %1424 = vmatprep.subr.mxu0 0.0
      %1425 = vmatpush1.msra.mxu0 0.0
      %1426 = vmatprep.subr.mxu0 0.0
      %1427 = vmatpush1.msra.mxu0 0.0
      %1428 = vmatprep.subr.mxu0 0.0
      %1429 = vmatpush1.msra.mxu0 0.0
      %1430 = vmatprep.subr.mxu0 0.0
      %1431 = vmatpush1.msra.mxu0 0.0
      %1432 = vmatprep.subr.mxu0 0.0
      %1433 = vmatpush1.msra.mxu0 0.0
      %1434 = vmatprep.subr.mxu0 0.0
      %1435 = vmatpush1.msra.mxu0 0.0
      %1436 = vmatprep.subr.mxu0 0.0
      %1437 = vmatpush1.msra.mxu0 0.0
      %1438 = vmatprep.subr.mxu0 0.0
      %1439 = vmatpush1.msra.mxu0 0.0
      %1440 = vmatprep.subr.mxu0 0.0
      %1441 = vmatpush1.msra.mxu0 0.0
      %1442 = vmatprep.subr.mxu0 0.0
      %1443 = vmatpush1.msra.mxu0 0.0
      %1444 = vmatprep.subr.mxu0 0.0
      %1445 = vmatpush1.msra.mxu0 0.0
      %1446 = vmatprep.subr.mxu0 0.0
      %1447 = vmatpush1.msra.mxu0 0.0
      %1448 = vmatprep.mubr.f32.mxu0 0.0
      %1449 = vmatmul.mubr.f32.gmra.mrb[0].mxu0 %v1382
      %v1450 = vpop.f32.mrb[0].mxu0
      %v1451 = vadd.f32 0.0, %v1450
      %v1452 = vpop.f32.mrb[0].mxu0
      %1453 = vdwg.mxu0
      %1455 = vrot.lane.b32.xlu0 %v1156, 112
      %v1456 = vpop.permute.xlu0 %1455
      %v1457 = vsel %vm1158, %v1456, 0
      %1459 = vmatprep.subr.mxu0 0.0
      %1460 = vmatpush1.msra.mxu0 %v323
      %1461 = vmatprep.subr.mxu0 0.0
      %1462 = vmatpush1.msra.mxu0 %v324
      %1463 = vmatprep.subr.mxu0 0.0
      %1464 = vmatpush1.msra.mxu0 0.0
      %1465 = vmatprep.subr.mxu0 0.0
      %1466 = vmatpush1.msra.mxu0 0.0
      %1467 = vmatprep.subr.mxu0 0.0
      %1468 = vmatpush1.msra.mxu0 0.0
      %1469 = vmatprep.subr.mxu0 0.0
      %1470 = vmatpush1.msra.mxu0 0.0
      %1471 = vmatprep.subr.mxu0 0.0
      %1472 = vmatpush1.msra.mxu0 0.0
      %1473 = vmatprep.subr.mxu0 0.0
      %1474 = vmatpush1.msra.mxu0 0.0
      %1475 = vmatprep.subr.mxu0 0.0
      %1476 = vmatpush1.msra.mxu0 0.0
      %1477 = vmatprep.subr.mxu0 0.0
      %1478 = vmatpush1.msra.mxu0 0.0
      %1479 = vmatprep.subr.mxu0 0.0
      %1480 = vmatpush1.msra.mxu0 0.0
      %1481 = vmatprep.subr.mxu0 0.0
      %1482 = vmatpush1.msra.mxu0 0.0
      %1483 = vmatprep.subr.mxu0 0.0
      %1484 = vmatpush1.msra.mxu0 0.0
      %1485 = vmatprep.subr.mxu0 0.0
      %1486 = vmatpush1.msra.mxu0 0.0
      %1487 = vmatprep.subr.mxu0 0.0
      %1488 = vmatpush1.msra.mxu0 0.0
      %1489 = vmatprep.subr.mxu0 0.0
      %1490 = vmatpush1.msra.mxu0 0.0
      %1491 = vmatprep.subr.mxu0 0.0
      %1492 = vmatpush1.msra.mxu0 0.0
      %1493 = vmatprep.subr.mxu0 0.0
      %1494 = vmatpush1.msra.mxu0 0.0
      %1495 = vmatprep.subr.mxu0 0.0
      %1496 = vmatpush1.msra.mxu0 0.0
      %1497 = vmatprep.subr.mxu0 0.0
      %1498 = vmatpush1.msra.mxu0 0.0
      %1499 = vmatprep.subr.mxu0 0.0
      %1500 = vmatpush1.msra.mxu0 0.0
      %1501 = vmatprep.subr.mxu0 0.0
      %1502 = vmatpush1.msra.mxu0 0.0
      %1503 = vmatprep.subr.mxu0 0.0
      %1504 = vmatpush1.msra.mxu0 0.0
      %1505 = vmatprep.subr.mxu0 0.0
      %1506 = vmatpush1.msra.mxu0 0.0
      %1507 = vmatprep.subr.mxu0 0.0
      %1508 = vmatpush1.msra.mxu0 0.0
      %1509 = vmatprep.subr.mxu0 0.0
      %1510 = vmatpush1.msra.mxu0 0.0
      %1511 = vmatprep.subr.mxu0 0.0
      %1512 = vmatpush1.msra.mxu0 0.0
      %1513 = vmatprep.subr.mxu0 0.0
      %1514 = vmatpush1.msra.mxu0 0.0
      %1515 = vmatprep.subr.mxu0 0.0
      %1516 = vmatpush1.msra.mxu0 0.0
      %1517 = vmatprep.subr.mxu0 0.0
      %1518 = vmatpush1.msra.mxu0 0.0
      %1519 = vmatprep.subr.mxu0 0.0
      %1520 = vmatpush1.msra.mxu0 0.0
      %1521 = vmatprep.subr.mxu0 0.0
      %1522 = vmatpush1.msra.mxu0 0.0
      %1523 = vmatprep.mubr.f32.mxu0 0.0
      %1524 = vmatmul.mubr.f32.gmra.mrb[0].mxu0 %v1457
      %v1525 = vpop.f32.mrb[0].mxu0
      %v1526 = vadd.f32 0.0, %v1525
      %v1527 = vpop.f32.mrb[0].mxu0
      %1528 = vdwg.mxu0
      %1529 = vrot.lane.b32.xlu0 %v1156, 76
      %v1530 = vpop.permute.xlu0 %1529
      %v1531 = vsel %vm1158, %v1530, 0
      %1533 = vmatprep.subr.mxu0 0.0
      %1534 = vmatpush1.msra.mxu0 %v323
      %1535 = vmatprep.subr.mxu0 0.0
      %1536 = vmatpush1.msra.mxu0 %v324
      %1537 = vmatprep.subr.mxu0 0.0
      %1538 = vmatpush1.msra.mxu0 0.0
      %1539 = vmatprep.subr.mxu0 0.0
      %1540 = vmatpush1.msra.mxu0 0.0
      %1541 = vmatprep.subr.mxu0 0.0
      %1542 = vmatpush1.msra.mxu0 0.0
      %1543 = vmatprep.subr.mxu0 0.0
      %1544 = vmatpush1.msra.mxu0 0.0
      %1545 = vmatprep.subr.mxu0 0.0
      %1546 = vmatpush1.msra.mxu0 0.0
      %1547 = vmatprep.subr.mxu0 0.0
      %1548 = vmatpush1.msra.mxu0 0.0
      %1549 = vmatprep.subr.mxu0 0.0
      %1550 = vmatpush1.msra.mxu0 0.0
      %1551 = vmatprep.subr.mxu0 0.0
      %1552 = vmatpush1.msra.mxu0 0.0
      %1553 = vmatprep.subr.mxu0 0.0
      %1554 = vmatpush1.msra.mxu0 0.0
      %1555 = vmatprep.subr.mxu0 0.0
      %1556 = vmatpush1.msra.mxu0 0.0
      %1557 = vmatprep.subr.mxu0 0.0
      %1558 = vmatpush1.msra.mxu0 0.0
      %1559 = vmatprep.subr.mxu0 0.0
      %1560 = vmatpush1.msra.mxu0 0.0
      %1561 = vmatprep.subr.mxu0 0.0
      %1562 = vmatpush1.msra.mxu0 0.0
      %1563 = vmatprep.subr.mxu0 0.0
      %1564 = vmatpush1.msra.mxu0 0.0
      %1565 = vmatprep.subr.mxu0 0.0
      %1566 = vmatpush1.msra.mxu0 0.0
      %1567 = vmatprep.subr.mxu0 0.0
      %1568 = vmatpush1.msra.mxu0 0.0
      %1569 = vmatprep.subr.mxu0 0.0
      %1570 = vmatpush1.msra.mxu0 0.0
      %1571 = vmatprep.subr.mxu0 0.0
      %1572 = vmatpush1.msra.mxu0 0.0
      %1573 = vmatprep.subr.mxu0 0.0
      %1574 = vmatpush1.msra.mxu0 0.0
      %1575 = vmatprep.subr.mxu0 0.0
      %1576 = vmatpush1.msra.mxu0 0.0
      %1577 = vmatprep.subr.mxu0 0.0
      %1578 = vmatpush1.msra.mxu0 0.0
      %1579 = vmatprep.subr.mxu0 0.0
      %1580 = vmatpush1.msra.mxu0 0.0
      %1581 = vmatprep.subr.mxu0 0.0
      %1582 = vmatpush1.msra.mxu0 0.0
      %1583 = vmatprep.subr.mxu0 0.0
      %1584 = vmatpush1.msra.mxu0 0.0
      %1585 = vmatprep.subr.mxu0 0.0
      %1586 = vmatpush1.msra.mxu0 0.0
      %1587 = vmatprep.subr.mxu0 0.0
      %1588 = vmatpush1.msra.mxu0 0.0
      %1589 = vmatprep.subr.mxu0 0.0
      %1590 = vmatpush1.msra.mxu0 0.0
      %1591 = vmatprep.subr.mxu0 0.0
      %1592 = vmatpush1.msra.mxu0 0.0
      %1593 = vmatprep.subr.mxu0 0.0
      %1594 = vmatpush1.msra.mxu0 0.0
      %1595 = vmatprep.subr.mxu0 0.0
      %1596 = vmatpush1.msra.mxu0 0.0
      %1597 = vmatprep.mubr.f32.mxu0 0.0
      %1598 = vmatmul.mubr.f32.gmra.mrb[0].mxu0 %v1531
      %v1599 = vpop.f32.mrb[0].mxu0
      %v1600 = vadd.f32 0.0, %v1599
      %v1601 = vpop.f32.mrb[0].mxu0
      %1602 = vdwg.mxu0
      %1603 = vrot.lane.b32.xlu0 %v1156, 40
      %v1604 = vpop.permute.xlu0 %1603
      %v1605 = vsel %vm1158, %v1604, 0
      %1607 = vmatprep.subr.mxu0 0.0
      %1608 = vmatpush1.msra.mxu0 %v323
      %1609 = vmatprep.subr.mxu0 0.0
      %1610 = vmatpush1.msra.mxu0 %v324
      %1611 = vmatprep.subr.mxu0 0.0
      %1612 = vmatpush1.msra.mxu0 0.0
      %1613 = vmatprep.subr.mxu0 0.0
      %1614 = vmatpush1.msra.mxu0 0.0
      %1615 = vmatprep.subr.mxu0 0.0
      %1616 = vmatpush1.msra.mxu0 0.0
      %1617 = vmatprep.subr.mxu0 0.0
      %1618 = vmatpush1.msra.mxu0 0.0
      %1619 = vmatprep.subr.mxu0 0.0
      %1620 = vmatpush1.msra.mxu0 0.0
      %1621 = vmatprep.subr.mxu0 0.0
      %1622 = vmatpush1.msra.mxu0 0.0
      %1623 = vmatprep.subr.mxu0 0.0
      %1624 = vmatpush1.msra.mxu0 0.0
      %1625 = vmatprep.subr.mxu0 0.0
      %1626 = vmatpush1.msra.mxu0 0.0
      %1627 = vmatprep.subr.mxu0 0.0
      %1628 = vmatpush1.msra.mxu0 0.0
      %1629 = vmatprep.subr.mxu0 0.0
      %1630 = vmatpush1.msra.mxu0 0.0
      %1631 = vmatprep.subr.mxu0 0.0
      %1632 = vmatpush1.msra.mxu0 0.0
      %1633 = vmatprep.subr.mxu0 0.0
      %1634 = vmatpush1.msra.mxu0 0.0
      %1635 = vmatprep.subr.mxu0 0.0
      %1636 = vmatpush1.msra.mxu0 0.0
      %1637 = vmatprep.subr.mxu0 0.0
      %1638 = vmatpush1.msra.mxu0 0.0
      %1639 = vmatprep.subr.mxu0 0.0
      %1640 = vmatpush1.msra.mxu0 0.0
      %1641 = vmatprep.subr.mxu0 0.0
      %1642 = vmatpush1.msra.mxu0 0.0
      %1643 = vmatprep.subr.mxu0 0.0
      %1644 = vmatpush1.msra.mxu0 0.0
      %1645 = vmatprep.subr.mxu0 0.0
      %1646 = vmatpush1.msra.mxu0 0.0
      %1647 = vmatprep.subr.mxu0 0.0
      %1648 = vmatpush1.msra.mxu0 0.0
      %1649 = vmatprep.subr.mxu0 0.0
      %1650 = vmatpush1.msra.mxu0 0.0
      %1651 = vmatprep.subr.mxu0 0.0
      %1652 = vmatpush1.msra.mxu0 0.0
      %1653 = vmatprep.subr.mxu0 0.0
      %1654 = vmatpush1.msra.mxu0 0.0
      %1655 = vmatprep.subr.mxu0 0.0
      %1656 = vmatpush1.msra.mxu0 0.0
      %1657 = vmatprep.subr.mxu0 0.0
      %1658 = vmatpush1.msra.mxu0 0.0
      %1659 = vmatprep.subr.mxu0 0.0
      %1660 = vmatpush1.msra.mxu0 0.0
      %1661 = vmatprep.subr.mxu0 0.0
      %1662 = vmatpush1.msra.mxu0 0.0
      %1663 = vmatprep.subr.mxu0 0.0
      %1664 = vmatpush1.msra.mxu0 0.0
      %1665 = vmatprep.subr.mxu0 0.0
      %1666 = vmatpush1.msra.mxu0 0.0
      %1667 = vmatprep.subr.mxu0 0.0
      %1668 = vmatpush1.msra.mxu0 0.0
      %1669 = vmatprep.subr.mxu0 0.0
      %1670 = vmatpush1.msra.mxu0 0.0
      %1671 = vmatprep.mubr.f32.mxu0 0.0
      %1672 = vmatmul.mubr.f32.gmra.mrb[0].mxu0 %v1605
      %v1673 = vpop.f32.mrb[0].mxu0
      %v1674 = vadd.f32 0.0, %v1673
      %v1675 = vpop.f32.mrb[0].mxu0
      %1676 = vdwg.mxu0
      %1678 = vrot.lane.b32.xlu0 %v1156, 4
      %v1679 = vpop.permute.xlu0 %1678
      %1680 = vrot.lane.b32.xlu0 %v1157, 4
      %v1681 = vpop.permute.xlu0 %1680
      %vm1682 = vcmask 31744
      %v1683 = vsel %vm1682, %v1679, %v1681
      %v1684 = vsel %vm1158, %v1683, 0
      %1686 = vmatprep.subr.mxu0 0.0
      %1687 = vmatpush1.msra.mxu0 %v323
      %1688 = vmatprep.subr.mxu0 0.0
      %1689 = vmatpush1.msra.mxu0 %v324
      %1690 = vmatprep.subr.mxu0 0.0
      %1691 = vmatpush1.msra.mxu0 0.0
      %1692 = vmatprep.subr.mxu0 0.0
      %1693 = vmatpush1.msra.mxu0 0.0
      %1694 = vmatprep.subr.mxu0 0.0
      %1695 = vmatpush1.msra.mxu0 0.0
      %1696 = vmatprep.subr.mxu0 0.0
      %1697 = vmatpush1.msra.mxu0 0.0
      %1698 = vmatprep.subr.mxu0 0.0
      %1699 = vmatpush1.msra.mxu0 0.0
      %1700 = vmatprep.subr.mxu0 0.0
      %1701 = vmatpush1.msra.mxu0 0.0
      %1702 = vmatprep.subr.mxu0 0.0
      %1703 = vmatpush1.msra.mxu0 0.0
      %1704 = vmatprep.subr.mxu0 0.0
      %1705 = vmatpush1.msra.mxu0 0.0
      %1706 = vmatprep.subr.mxu0 0.0
      %1707 = vmatpush1.msra.mxu0 0.0
      %1708 = vmatprep.subr.mxu0 0.0
      %1709 = vmatpush1.msra.mxu0 0.0
      %1710 = vmatprep.subr.mxu0 0.0
      %1711 = vmatpush1.msra.mxu0 0.0
      %1712 = vmatprep.subr.mxu0 0.0
      %1713 = vmatpush1.msra.mxu0 0.0
      %1714 = vmatprep.subr.mxu0 0.0
      %1715 = vmatpush1.msra.mxu0 0.0
      %1716 = vmatprep.subr.mxu0 0.0
      %1717 = vmatpush1.msra.mxu0 0.0
      %1718 = vmatprep.subr.mxu0 0.0
      %1719 = vmatpush1.msra.mxu0 0.0
      %1720 = vmatprep.subr.mxu0 0.0
      %1721 = vmatpush1.msra.mxu0 0.0
      %1722 = vmatprep.subr.mxu0 0.0
      %1723 = vmatpush1.msra.mxu0 0.0
      %1724 = vmatprep.subr.mxu0 0.0
      %1725 = vmatpush1.msra.mxu0 0.0
      %1726 = vmatprep.subr.mxu0 0.0
      %1727 = vmatpush1.msra.mxu0 0.0
      %1728 = vmatprep.subr.mxu0 0.0
      %1729 = vmatpush1.msra.mxu0 0.0
      %1730 = vmatprep.subr.mxu0 0.0
      %1731 = vmatpush1.msra.mxu0 0.0
      %1732 = vmatprep.subr.mxu0 0.0
      %1733 = vmatpush1.msra.mxu0 0.0
      %1734 = vmatprep.subr.mxu0 0.0
      %1735 = vmatpush1.msra.mxu0 0.0
      %1736 = vmatprep.subr.mxu0 0.0
      %1737 = vmatpush1.msra.mxu0 0.0
      %1738 = vmatprep.subr.mxu0 0.0
      %1739 = vmatpush1.msra.mxu0 0.0
      %1740 = vmatprep.subr.mxu0 0.0
      %1741 = vmatpush1.msra.mxu0 0.0
      %1742 = vmatprep.subr.mxu0 0.0
      %1743 = vmatpush1.msra.mxu0 0.0
      %1744 = vmatprep.subr.mxu0 0.0
      %1745 = vmatpush1.msra.mxu0 0.0
      %1746 = vmatprep.subr.mxu0 0.0
      %1747 = vmatpush1.msra.mxu0 0.0
      %1748 = vmatprep.subr.mxu0 0.0
      %1749 = vmatpush1.msra.mxu0 0.0
      %1750 = vmatprep.mubr.f32.mxu0 0.0
      %1751 = vmatmul.mubr.f32.gmra.mrb[0].mxu0 %v1684
      %v1752 = vpop.f32.mrb[0].mxu0
      %v1753 = vadd.f32 0.0, %v1752
      %v1754 = vpop.f32.mrb[0].mxu0
      %1755 = vdwg.mxu0
      %1757 = vrot.lane.b32.xlu0 %v1303, 8
      %v1758 = vpop.permute.xlu0 %1757
      %1761 = vrot.lane.b32.xlu0 %v1377, 16
      %v1762 = vpop.permute.xlu0 %1761
      %1765 = vrot.lane.b32.xlu0 %v1451, 24
      %v1766 = vpop.permute.xlu0 %1765
      %1769 = vrot.lane.b32.xlu0 %v1526, 32
      %v1770 = vpop.permute.xlu0 %1769
      %1773 = vrot.lane.b32.xlu0 %v1600, 40
      %v1774 = vpop.permute.xlu0 %1773
      %1777 = vrot.lane.b32.xlu0 %v1674, 48
      %v1778 = vpop.permute.xlu0 %1777
      %1781 = vrot.lane.b32.xlu0 %v1753, 56
      %v1782 = vpop.permute.xlu0 %1781
      %vm1784 = vcmask 64512
      %v1785 = vsel %vm1784, %v1229, %v1758
      %v1786 = vsel %vm1158, %v1785, %v1762
      %vm1787 = vcmask 195584
      %v1788 = vsel %vm1787, %v1786, %v1766
      %v1789 = vsel %vm1120, %v1788, %v1770
      %vm1790 = vcmask 326656
      %v1791 = vsel %vm1790, %v1789, %v1774
      %vm1792 = vcmask 392192
      %v1793 = vsel %vm1792, %v1791, %v1778
      %vm1794 = vcmask 457728
      %v1795 = vsel %vm1794, %v1793, %v1782
      %vm1796 = vcmask 523264
      %1797 = vst.msk [vmem:[%s316] sm:$0xff] %vm1796, %v1795
      %p1798 = scmp.lt.s32.totalorder %s20, 1
      %s1799 = scalar_select %p1798, %s20, 1
      %s1800 = smul.addr %s1799, 3
      %s1801 = smul.addr %s1800, 8
      %s1802 = scalar_lea.vmem %s7, %s1801
      %p1803 = scmp.lt.s32.totalorder %s20, 1
      %s1804 = scalar_select %p1803, %s20, 1
      %s1805 = smul.addr %s1804, 8
      %s1806 = scalar_lea.vmem %s8, %s1805
      // Predicated region
      $region49: #{downsample_pallas.1} parent=47 // pred_check
        %p1807 = pneg %p190
      $region50: #{downsample_pallas.1} parent=47 // pred_check_branch
        %1809 = sbr.rel (%p1807) target = $region52
      $region51: #{downsample_pallas.1} parent=47 // pred_region
        _
      $region52: #{downsample_pallas.1} parent=47 // pred_fallthru
        _
      // Predicated region
      $region53: #{downsample_pallas.1} parent=47 // pred_check
        %p1810 = pneg %p216
      $region54: #{downsample_pallas.1} parent=47 // pred_check_branch
        %1812 = sbr.rel (%p1810) target = $region56
      $region55: #{downsample_pallas.1} parent=47 // pred_region
        _
      $region56: #{downsample_pallas.1} parent=47 // pred_fallthru
        _
    $region48: #{downsample_pallas.1} parent=5 // pred_fallthru
      _
    %p1813 = scmp.le.s32.totalorder 2, %s15
    // Predicated region
    $region57: #{downsample_pallas.1} parent=5 // pred_check
      %p1814 = pneg %p1813
    $region58: #{downsample_pallas.1} parent=5 // pred_check_branch
      %1816 = sbr.rel (%p1814) target = $region60
    $region59: #{downsample_pallas.1} parent=5 // pred_region
      %s1817 = ssub.s32 %s15, 2
      // Predicated region
      $region61: #{downsample_pallas.1} parent=59 // pred_check
        %p1818 = pneg %p196
      $region62: #{downsample_pallas.1} parent=59 // pred_check_branch
        %1820 = sbr.rel (%p1818) target = $region64
      $region63: #{downsample_pallas.1} parent=59 // pred_region
        %p1821 = scmp.lt.s32.totalorder %s21, 1
        %s1822 = scalar_select %p1821, %s21, 1
        %s1823 = smul.addr %s1822, 3
        %s1824 = smul.addr %s1823, 8
        %s1825 = scalar_lea.vmem %s7, %s1824
      $region64: #{downsample_pallas.1} parent=59 // pred_fallthru
        _
      // Predicated region
      $region65: #{downsample_pallas.1} parent=59 // pred_check
        %p1826 = pneg %p222
      $region66: #{downsample_pallas.1} parent=59 // pred_check_branch
        %1828 = sbr.rel (%p1826) target = $region68
      $region67: #{downsample_pallas.1} parent=59 // pred_region
        %p1829 = scmp.lt.s32.totalorder %s21, 1
        %s1830 = scalar_select %p1829, %s21, 1
        %s1831 = smul.addr %s1830, 8
        %s1832 = scalar_lea.vmem %s8, %s1831
      $region68: #{downsample_pallas.1} parent=59 // pred_fallthru
        _
    $region60: #{downsample_pallas.1} parent=5 // pred_fallthru
      _
  $region6: #{downsample_pallas.1} parent=0 // loop_footer
    %s19 = sadd.s32 1, %s15
  $region7: #{downsample_pallas.1} parent=0 // loop_footer_branch
    %14 = sbr.rel target = $region3
  $region8: #{downsample_pallas.1} parent=0 // loop_exit
    _

</llo_original>
